<compile_context>
chip_gen: v6e
topology: v6e:2x2x1
jax: 0.10.0
libtpu: 0.0.40
codegen_flags: <defaults>
</compile_context>

<pallas_src>
import functools

import jax
import jax.numpy as jnp
from jax.experimental import pallas as pl
from jax.experimental.pallas import tpu as pltpu

M = 128      # feature size (module default m=2048; reduced for the demo)
N = 8        # sequence length (x.view(-1, m) -> (N, M))
LANES = 128  # lane-dense output padding
EPS = 1e-6


def _layer_norm(v, gamma, beta):
    # VASNet's custom LayerNorm: unbiased std (torch .std default) and eps
    # added to the std (NOT nn.LayerNorm semantics) -- keep exactly that.
    m = v.shape[-1]
    mean = jnp.mean(v, axis=-1, keepdims=True)
    var = jnp.sum((v - mean) ** 2, axis=-1, keepdims=True) / (m - 1)
    inv = pl.reciprocal(jnp.sqrt(var) + EPS, approx=True)   # EUP, not VPU divide
    return gamma * (v - mean) * inv + beta


def vasnet_kernel(n, m,
                  x_ref, w_xproj_ref, w_hh_ref, bias_ref,
                  wout_ref, g_y_ref, b_y_ref, wka_ref, bka_ref,
                  g_ka_ref, b_ka_ref, wkd_ref, bkd_ref,
                  scores_ref, att_ref, v_scratch, gates_scratch):
    x = x_ref[...]                                           # (n, m) f32
    x_bf = x.astype(jnp.bfloat16)

    # ---------------- SelfAttention ----------------
    # One fused MXU pass for all non-recurrent projections of x:
    #   [K | Q | gates_x] = x @ [Wk | Wq | W_ih]             (n, 6m)
    proj = jnp.dot(x_bf, w_xproj_ref[...], preferred_element_type=jnp.float32)
    K = proj[:, :m]                                          # (n, m)
    Q = proj[:, m:2 * m]                                     # (n, m)
    # LSTM input projection hoisted out of the recurrence; parked in VMEM so
    # only one row at a time is live in vregs during the serial loop.
    gates_scratch[...] = proj[:, 2 * m:] + bias_ref[...]     # (n, 4m)

    # LSTM (V branch), h0 = c0 = 0, gate order i, f, g, o (PyTorch).
    w_hh = w_hh_ref[...]                                     # (m, 4m) bf16

    def lstm_step(t, carry):
        h, c = carry
        gates = (gates_scratch[pl.ds(t, 1), :]
                 + jnp.dot(h.astype(jnp.bfloat16), w_hh,
                           preferred_element_type=jnp.float32))   # (1, 4m)
        if_g = jax.nn.sigmoid(gates[:, :2 * m])              # fused i|f sigmoid slab
        i_g = if_g[:, :m]
        f_g = if_g[:, m:]
        g_g = jnp.tanh(gates[:, 2 * m:3 * m])
        o_g = jax.nn.sigmoid(gates[:, 3 * m:])
        c = f_g * c + i_g * g_g
        h = o_g * jnp.tanh(c)
        v_scratch[pl.ds(t, 1), :] = h                        # VMEM, no concat
        return h, c

    h0 = jnp.zeros((1, m), jnp.float32)
    c0 = jnp.zeros((1, m), jnp.float32)
    jax.lax.fori_loop(0, n, lstm_step, (h0, c0), unroll=True)
    V = v_scratch[...]                                       # (n, m)

    # logits = (Q @ K^T) * 0.06 -- scale on the small (n, n) slab; bf16
    # operands (full-rate MXU), f32 accumulation.
    logits = jax.lax.dot_general(
        Q.astype(jnp.bfloat16), K.astype(jnp.bfloat16),
        (((1,), (1,)), ((), ())),
        preferred_element_type=jnp.float32) * 0.06           # (n, n)
    e = jnp.exp(logits - jnp.max(logits, axis=-1, keepdims=True))
    att = e * pl.reciprocal(jnp.sum(e, axis=-1, keepdims=True), approx=True)
    # Lane-dense (n, LANES) output tile: zero-fill once, then store the (n, n)
    # att block into the first n lanes (tiny masked vst; no selection matmul,
    # no extra input DMA).
    att_ref[...] = jnp.zeros((n, LANES), jnp.float32)
    att_ref[:, :n] = att
    # dropout(att) -> identity at inference

    # y = (V^T @ att)^T == att^T @ V : contract over the row index of both.
    y = jax.lax.dot_general(
        att.astype(jnp.bfloat16), V.astype(jnp.bfloat16),
        (((0,), (0,)), ((), ())),
        preferred_element_type=jnp.float32)                   # (n, m)
    y = jnp.dot(y.astype(jnp.bfloat16), wout_ref[...],
                preferred_element_type=jnp.float32)            # (n, m)

    # ---------------- VASNet head ----------------
    y = y + x
    y = _layer_norm(y, g_y_ref[...], b_y_ref[...])
    y = (jnp.dot(y.astype(jnp.bfloat16), wka_ref[...],
                 preferred_element_type=jnp.float32) + bka_ref[...])
    y = jnp.maximum(y, 0.0)
    y = _layer_norm(y, g_ka_ref[...], b_ka_ref[...])
    # kd weights/bias are zero-padded to LANES output columns in the wrapper so
    # the (n, LANES) result stores lane-dense; column 0 carries the real score.
    score = (jnp.dot(y.astype(jnp.bfloat16), wkd_ref[...],
                     preferred_element_type=jnp.float32) + bkd_ref[...])
    scores_ref[...] = jax.nn.sigmoid(score)                    # (n, LANES)


def _cost_estimate(n, m, lanes, inputs, out_bytes):
    flops = (2 * n * m * 6 * m            # fused [K|Q|gates_x] projection
             + n * 2 * m * 4 * m          # recurrent h @ W_hh
             + 2 * 2 * n * n * m          # logits + att^T @ V
             + 2 * 2 * n * m * m          # output_linear + ka
             + 2 * n * m * lanes)         # kd (lane-padded)
    transcendentals = n * 5 * m + n * n + n * lanes + 4 * n
    bytes_accessed = sum(int(a.size) * a.dtype.itemsize for a in inputs) + out_bytes
    return pl.CostEstimate(flops=int(flops), transcendentals=int(transcendentals),
                           bytes_accessed=int(bytes_accessed))


def vasnet_forward(x, params, seq_len=None):
    """x: (1, N, M) float32. Returns (scores (1, N), att_weights (N, N))."""
    del seq_len  # unused, same as the PyTorch forward
    n, m = x.shape[1], x.shape[2]
    x2 = x.reshape(-1, m).astype(jnp.float32)
    bf16 = jnp.bfloat16

    # Fused non-recurrent projection weights: [Wk | Wq | W_ih] -> (m, 6m) bf16.
    w_xproj = jnp.concatenate(
        [params["wk"].T, params["wq"].T, params["w_ih"].T], axis=1).astype(bf16)

    # kd weights / bias zero-padded to LANES output columns (lane-dense store).
    wkd_pad = jnp.zeros((m, LANES), jnp.float32).at[:, :1].set(params["wkd"].T)
    bkd_pad = jnp.zeros((1, LANES), jnp.float32).at[:, :1].set(
        params["bkd"].reshape(1, 1))

    inputs = (
        x2,
        w_xproj,
        params["w_hh"].T.astype(bf16),
        (params["b_ih"] + params["b_hh"]).reshape(1, -1),
        params["wout"].T.astype(bf16),
        params["g_y"].reshape(1, -1), params["b_y"].reshape(1, -1),
        params["wka"].T.astype(bf16), params["bka"].reshape(1, -1),
        params["g_ka"].reshape(1, -1), params["b_ka"].reshape(1, -1),
        wkd_pad.astype(bf16), bkd_pad,
    )
    # No grid -> each operand is placed in VMEM exactly once (nothing to
    # double-buffer), so plain memory_space specs are already single-copy.
    vmem = pl.BlockSpec(memory_space=pltpu.MemorySpace.VMEM)
    out_bytes = 2 * n * LANES * 4

    scores_pad, att_pad = pl.pallas_call(
        functools.partial(vasnet_kernel, n, m),
        out_shape=(jax.ShapeDtypeStruct((n, LANES), jnp.float32),
                   jax.ShapeDtypeStruct((n, LANES), jnp.float32)),
        in_specs=[vmem] * len(inputs),
        out_specs=(vmem, vmem),
        scratch_shapes=[pltpu.VMEM((n, m), jnp.float32),        # per-step h (V)
                        pltpu.VMEM((n, 4 * m), jnp.float32)],   # hoisted gates_x
        compiler_params=pltpu.CompilerParams(
            vmem_limit_bytes=48 * 1024 * 1024),
        cost_estimate=_cost_estimate(n, m, LANES, inputs, out_bytes),
    )(*inputs)

    scores = scores_pad[:, :1].reshape(1, -1)   # column 0 holds the real score
    att = att_pad[:, :n]                        # first n lanes hold att weights
    return scores, att


def init_params(key, m):
    ks = jax.random.split(key, 12)
    s = 0.05
    nrm = lambda k, shape: (jax.random.normal(k, shape, jnp.float32) * s)
    return {
        # SelfAttention
        "wk": nrm(ks[0], (m, m)),          # Linear K (no bias), (out, in)
        "wq": nrm(ks[1], (m, m)),          # Linear Q (no bias)
        "w_ih": nrm(ks[2], (4 * m, m)),    # LSTM weight_ih_l0
        "w_hh": nrm(ks[3], (4 * m, m)),    # LSTM weight_hh_l0
        "b_ih": nrm(ks[4], (4 * m,)),
        "b_hh": nrm(ks[5], (4 * m,)),
        "wout": nrm(ks[6], (m, m)),        # output_linear (no bias)
        # VASNet head
        "g_y": jnp.ones((m,), jnp.float32),
        "b_y": jnp.zeros((m,), jnp.float32),
        "wka": nrm(ks[7], (m, m)),
        "bka": nrm(ks[8], (m,)),
        "g_ka": jnp.ones((m,), jnp.float32),
        "b_ka": jnp.zeros((m,), jnp.float32),
        "wkd": nrm(ks[9], (1, m)),
        "bkd": nrm(ks[10], (1,)),
    }


if __name__ == "__main__":
    key = jax.random.PRNGKey(0)
    pkey, xkey = jax.random.split(key)
    params = init_params(pkey, M)
    x = jax.random.normal(xkey, (1, N, M), jnp.float32)

    scores, att_weights = vasnet_forward(x, params, seq_len=N)
    jax.block_until_ready((scores, att_weights))
    assert scores.shape == (1, N) and att_weights.shape == (N, N)
    assert bool(jnp.all(jnp.isfinite(scores)))
    assert bool(jnp.all(jnp.isfinite(att_weights)))
    # Attention rows must sum to 1 (softmax sanity, loose tol for approx recip).
    assert bool(jnp.all(jnp.abs(jnp.sum(att_weights, axis=-1) - 1.0) < 1e-2))
    print("KERNEL_OK")
</pallas_src>

<mosaic_0001>
module attributes {stable_mosaic.version = 11 : i64} {
  func.func @vasnet_kernel(%arg0: memref<8x128xf32, #tpu.memory_space<vmem>>, %arg1: memref<128x768xbf16, #tpu.memory_space<vmem>>, %arg2: memref<128x512xbf16, #tpu.memory_space<vmem>>, %arg3: memref<1x512xf32, #tpu.memory_space<vmem>>, %arg4: memref<128x128xbf16, #tpu.memory_space<vmem>>, %arg5: memref<1x128xf32, #tpu.memory_space<vmem>>, %arg6: memref<1x128xf32, #tpu.memory_space<vmem>>, %arg7: memref<128x128xbf16, #tpu.memory_space<vmem>>, %arg8: memref<1x128xf32, #tpu.memory_space<vmem>>, %arg9: memref<1x128xf32, #tpu.memory_space<vmem>>, %arg10: memref<1x128xf32, #tpu.memory_space<vmem>>, %arg11: memref<128x128xbf16, #tpu.memory_space<vmem>>, %arg12: memref<1x128xf32, #tpu.memory_space<vmem>>, %arg13: memref<8x128xf32, #tpu.memory_space<vmem>>, %arg14: memref<8x128xf32, #tpu.memory_space<vmem>>, %arg15: memref<8x128xf32, #tpu.memory_space<vmem>>, %arg16: memref<8x512xf32, #tpu.memory_space<vmem>>) attributes {dimension_semantics = [], scalar_prefetch = 0 : i64, scratch_operands = 2 : i64, tpu.core_type = #tpu.core_type<tc>} {
    %c0 = arith.constant 0 : index
    %c0_0 = arith.constant 0 : index
    %0 = vector.load %arg0[%c0, %c0_0] : memref<8x128xf32, #tpu.memory_space<vmem>>, vector<8x128xf32>
    %1 = arith.truncf %0 : vector<8x128xf32> to vector<8x128xbf16>
    %c0_1 = arith.constant 0 : index
    %c0_2 = arith.constant 0 : index
    %2 = vector.load %arg1[%c0_1, %c0_2] : memref<128x768xbf16, #tpu.memory_space<vmem>>, vector<128x768xbf16>
    %cst = arith.constant dense<0.000000e+00> : vector<8x768xf32>
    %3 = tpu.matmul %1, %2, %cst {dimension_numbers = #tpu.dot_dimension_numbers<[1], [0], [0], [1], [0, 0, 1, 1], [], []>} : vector<8x128xbf16>, vector<128x768xbf16>, vector<8x768xf32> -> vector<8x768xf32>
    %4 = vector.extract_strided_slice %3 {offsets = [0, 0], sizes = [8, 128], strides = [1, 1]} : vector<8x768xf32> to vector<8x128xf32>
    %5 = vector.extract_strided_slice %3 {offsets = [0, 128], sizes = [8, 128], strides = [1, 1]} : vector<8x768xf32> to vector<8x128xf32>
    %6 = vector.extract_strided_slice %3 {offsets = [0, 256], sizes = [8, 512], strides = [1, 1]} : vector<8x768xf32> to vector<8x512xf32>
    %c0_3 = arith.constant 0 : index
    %c0_4 = arith.constant 0 : index
    %7 = vector.load %arg3[%c0_3, %c0_4] : memref<1x512xf32, #tpu.memory_space<vmem>>, vector<1x512xf32>
    %8 = vector.broadcast %7 : vector<1x512xf32> to vector<8x512xf32>
    %9 = arith.addf %6, %8 : vector<8x512xf32>
    %c0_5 = arith.constant 0 : index
    %c0_6 = arith.constant 0 : index
    %10 = vector.load %arg16[%c0_5, %c0_6] : memref<8x512xf32, #tpu.memory_space<vmem>>, vector<8x512xf32>
    tpu.vector_store %arg16[%c0_5, %c0_6], %9 {strides = array<i32>} : memref<8x512xf32, #tpu.memory_space<vmem>>, vector<8x512xf32>,
    %c0_7 = arith.constant 0 : index
    %c0_8 = arith.constant 0 : index
    %11 = vector.load %arg2[%c0_7, %c0_8] : memref<128x512xbf16, #tpu.memory_space<vmem>>, vector<128x512xbf16>
    %cst_9 = arith.constant 0.000000e+00 : f32
    %12 = vector.broadcast %cst_9 : f32 to vector<1x128xf32>
    %cst_10 = arith.constant 0.000000e+00 : f32
    %13 = vector.broadcast %cst_10 : f32 to vector<1x128xf32>
    %c0_i32 = arith.constant 0 : i32
    %14 = arith.index_cast %c0_i32 : i32 to index
    %c0_11 = arith.constant 0 : index
    %15 = vector.load %arg16[%14, %c0_11] : memref<8x512xf32, #tpu.memory_space<vmem>>, vector<1x512xf32>
    %16 = arith.truncf %12 : vector<1x128xf32> to vector<1x128xbf16>
    %cst_12 = arith.constant dense<0.000000e+00> : vector<1x512xf32>
    %17 = tpu.matmul %16, %11, %cst_12 {dimension_numbers = #tpu.dot_dimension_numbers<[1], [0], [0], [1], [0, 0, 1, 1], [], []>} : vector<1x128xbf16>, vector<128x512xbf16>, vector<1x512xf32> -> vector<1x512xf32>
    %18 = arith.addf %15, %17 : vector<1x512xf32>
    %19 = vector.extract_strided_slice %18 {offsets = [0, 0], sizes = [1, 256], strides = [1, 1]} : vector<1x512xf32> to vector<1x256xf32>
    %20 = arith.negf %19 : vector<1x256xf32>
    %21 = math.exp %20 : vector<1x256xf32>
    %cst_13 = arith.constant 1.000000e+00 : f32
    %22 = vector.broadcast %cst_13 : f32 to vector<1x256xf32>
    %23 = arith.addf %22, %21 : vector<1x256xf32>
    %24 = arith.divf %22, %23 : vector<1x256xf32>
    %25 = vector.extract_strided_slice %24 {offsets = [0, 0], sizes = [1, 128], strides = [1, 1]} : vector<1x256xf32> to vector<1x128xf32>
    %26 = vector.extract_strided_slice %24 {offsets = [0, 128], sizes = [1, 128], strides = [1, 1]} : vector<1x256xf32> to vector<1x128xf32>
    %27 = vector.extract_strided_slice %18 {offsets = [0, 256], sizes = [1, 128], strides = [1, 1]} : vector<1x512xf32> to vector<1x128xf32>
    %28 = math.tanh %27 : vector<1x128xf32>
    %29 = vector.extract_strided_slice %18 {offsets = [0, 384], sizes = [1, 128], strides = [1, 1]} : vector<1x512xf32> to vector<1x128xf32>
    %30 = arith.negf %29 : vector<1x128xf32>
    %31 = math.exp %30 : vector<1x128xf32>
    %cst_14 = arith.constant 1.000000e+00 : f32
    %32 = vector.broadcast %cst_14 : f32 to vector<1x128xf32>
    %33 = arith.addf %32, %31 : vector<1x128xf32>
    %34 = arith.divf %32, %33 : vector<1x128xf32>
    %35 = arith.mulf %26, %13 : vector<1x128xf32>
    %36 = arith.mulf %25, %28 : vector<1x128xf32>
    %37 = arith.addf %35, %36 : vector<1x128xf32>
    %38 = math.tanh %37 : vector<1x128xf32>
    %39 = arith.mulf %34, %38 : vector<1x128xf32>
    %40 = arith.index_cast %c0_i32 : i32 to index
    %c0_15 = arith.constant 0 : index
    %41 = vector.load %arg15[%40, %c0_15] : memref<8x128xf32, #tpu.memory_space<vmem>>, vector<1x128xf32>
    tpu.vector_store %arg15[%40, %c0_15], %39 {strides = array<i32>} : memref<8x128xf32, #tpu.memory_space<vmem>>, vector<1x128xf32>,
    %c1_i32 = arith.constant 1 : i32
    %42 = arith.index_cast %c1_i32 : i32 to index
    %c0_16 = arith.constant 0 : index
    %43 = vector.load %arg16[%42, %c0_16] : memref<8x512xf32, #tpu.memory_space<vmem>>, vector<1x512xf32>
    %44 = arith.truncf %39 : vector<1x128xf32> to vector<1x128xbf16>
    %cst_17 = arith.constant dense<0.000000e+00> : vector<1x512xf32>
    %45 = tpu.matmul %44, %11, %cst_17 {dimension_numbers = #tpu.dot_dimension_numbers<[1], [0], [0], [1], [0, 0, 1, 1], [], []>} : vector<1x128xbf16>, vector<128x512xbf16>, vector<1x512xf32> -> vector<1x512xf32>
    %46 = arith.addf %43, %45 : vector<1x512xf32>
    %47 = vector.extract_strided_slice %46 {offsets = [0, 0], sizes = [1, 256], strides = [1, 1]} : vector<1x512xf32> to vector<1x256xf32>
    %48 = arith.negf %47 : vector<1x256xf32>
    %49 = math.exp %48 : vector<1x256xf32>
    %cst_18 = arith.constant 1.000000e+00 : f32
    %50 = vector.broadcast %cst_18 : f32 to vector<1x256xf32>
    %51 = arith.addf %50, %49 : vector<1x256xf32>
    %52 = arith.divf %50, %51 : vector<1x256xf32>
    %53 = vector.extract_strided_slice %52 {offsets = [0, 0], sizes = [1, 128], strides = [1, 1]} : vector<1x256xf32> to vector<1x128xf32>
    %54 = vector.extract_strided_slice %52 {offsets = [0, 128], sizes = [1, 128], strides = [1, 1]} : vector<1x256xf32> to vector<1x128xf32>
    %55 = vector.extract_strided_slice %46 {offsets = [0, 256], sizes = [1, 128], strides = [1, 1]} : vector<1x512xf32> to vector<1x128xf32>
    %56 = math.tanh %55 : vector<1x128xf32>
    %57 = vector.extract_strided_slice %46 {offsets = [0, 384], sizes = [1, 128], strides = [1, 1]} : vector<1x512xf32> to vector<1x128xf32>
    %58 = arith.negf %57 : vector<1x128xf32>
    %59 = math.exp %58 : vector<1x128xf32>
    %cst_19 = arith.constant 1.000000e+00 : f32
    %60 = vector.broadcast %cst_19 : f32 to vector<1x128xf32>
    %61 = arith.addf %60, %59 : vector<1x128xf32>
    %62 = arith.divf %60, %61 : vector<1x128xf32>
    %63 = arith.mulf %54, %37 : vector<1x128xf32>
    %64 = arith.mulf %53, %56 : vector<1x128xf32>
    %65 = arith.addf %63, %64 : vector<1x128xf32>
    %66 = math.tanh %65 : vector<1x128xf32>
    %67 = arith.mulf %62, %66 : vector<1x128xf32>
    %68 = arith.index_cast %c1_i32 : i32 to index
    %c0_20 = arith.constant 0 : index
    %69 = vector.load %arg15[%68, %c0_20] : memref<8x128xf32, #tpu.memory_space<vmem>>, vector<1x128xf32>
    tpu.vector_store %arg15[%68, %c0_20], %67 {strides = array<i32>} : memref<8x128xf32, #tpu.memory_space<vmem>>, vector<1x128xf32>,
    %c2_i32 = arith.constant 2 : i32
    %70 = arith.index_cast %c2_i32 : i32 to index
    %c0_21 = arith.constant 0 : index
    %71 = vector.load %arg16[%70, %c0_21] : memref<8x512xf32, #tpu.memory_space<vmem>>, vector<1x512xf32>
    %72 = arith.truncf %67 : vector<1x128xf32> to vector<1x128xbf16>
    %cst_22 = arith.constant dense<0.000000e+00> : vector<1x512xf32>
    %73 = tpu.matmul %72, %11, %cst_22 {dimension_numbers = #tpu.dot_dimension_numbers<[1], [0], [0], [1], [0, 0, 1, 1], [], []>} : vector<1x128xbf16>, vector<128x512xbf16>, vector<1x512xf32> -> vector<1x512xf32>
    %74 = arith.addf %71, %73 : vector<1x512xf32>
    %75 = vector.extract_strided_slice %74 {offsets = [0, 0], sizes = [1, 256], strides = [1, 1]} : vector<1x512xf32> to vector<1x256xf32>
    %76 = arith.negf %75 : vector<1x256xf32>
    %77 = math.exp %76 : vector<1x256xf32>
    %cst_23 = arith.constant 1.000000e+00 : f32
    %78 = vector.broadcast %cst_23 : f32 to vector<1x256xf32>
    %79 = arith.addf %78, %77 : vector<1x256xf32>
    %80 = arith.divf %78, %79 : vector<1x256xf32>
    %81 = vector.extract_strided_slice %80 {offsets = [0, 0], sizes = [1, 128], strides = [1, 1]} : vector<1x256xf32> to vector<1x128xf32>
    %82 = vector.extract_strided_slice %80 {offsets = [0, 128], sizes = [1, 128], strides = [1, 1]} : vector<1x256xf32> to vector<1x128xf32>
    %83 = vector.extract_strided_slice %74 {offsets = [0, 256], sizes = [1, 128], strides = [1, 1]} : vector<1x512xf32> to vector<1x128xf32>
    %84 = math.tanh %83 : vector<1x128xf32>
    %85 = vector.extract_strided_slice %74 {offsets = [0, 384], sizes = [1, 128], strides = [1, 1]} : vector<1x512xf32> to vector<1x128xf32>
    %86 = arith.negf %85 : vector<1x128xf32>
    %87 = math.exp %86 : vector<1x128xf32>
    %cst_24 = arith.constant 1.000000e+00 : f32
    %88 = vector.broadcast %cst_24 : f32 to vector<1x128xf32>
    %89 = arith.addf %88, %87 : vector<1x128xf32>
    %90 = arith.divf %88, %89 : vector<1x128xf32>
    %91 = arith.mulf %82, %65 : vector<1x128xf32>
    %92 = arith.mulf %81, %84 : vector<1x128xf32>
    %93 = arith.addf %91, %92 : vector<1x128xf32>
    %94 = math.tanh %93 : vector<1x128xf32>
    %95 = arith.mulf %90, %94 : vector<1x128xf32>
    %96 = arith.index_cast %c2_i32 : i32 to index
    %c0_25 = arith.constant 0 : index
    %97 = vector.load %arg15[%96, %c0_25] : memref<8x128xf32, #tpu.memory_space<vmem>>, vector<1x128xf32>
    tpu.vector_store %arg15[%96, %c0_25], %95 {strides = array<i32>} : memref<8x128xf32, #tpu.memory_space<vmem>>, vector<1x128xf32>,
    %c3_i32 = arith.constant 3 : i32
    %98 = arith.index_cast %c3_i32 : i32 to index
    %c0_26 = arith.constant 0 : index
    %99 = vector.load %arg16[%98, %c0_26] : memref<8x512xf32, #tpu.memory_space<vmem>>, vector<1x512xf32>
    %100 = arith.truncf %95 : vector<1x128xf32> to vector<1x128xbf16>
    %cst_27 = arith.constant dense<0.000000e+00> : vector<1x512xf32>
    %101 = tpu.matmul %100, %11, %cst_27 {dimension_numbers = #tpu.dot_dimension_numbers<[1], [0], [0], [1], [0, 0, 1, 1], [], []>} : vector<1x128xbf16>, vector<128x512xbf16>, vector<1x512xf32> -> vector<1x512xf32>
    %102 = arith.addf %99, %101 : vector<1x512xf32>
    %103 = vector.extract_strided_slice %102 {offsets = [0, 0], sizes = [1, 256], strides = [1, 1]} : vector<1x512xf32> to vector<1x256xf32>
    %104 = arith.negf %103 : vector<1x256xf32>
    %105 = math.exp %104 : vector<1x256xf32>
    %cst_28 = arith.constant 1.000000e+00 : f32
    %106 = vector.broadcast %cst_28 : f32 to vector<1x256xf32>
    %107 = arith.addf %106, %105 : vector<1x256xf32>
    %108 = arith.divf %106, %107 : vector<1x256xf32>
    %109 = vector.extract_strided_slice %108 {offsets = [0, 0], sizes = [1, 128], strides = [1, 1]} : vector<1x256xf32> to vector<1x128xf32>
    %110 = vector.extract_strided_slice %108 {offsets = [0, 128], sizes = [1, 128], strides = [1, 1]} : vector<1x256xf32> to vector<1x128xf32>
    %111 = vector.extract_strided_slice %102 {offsets = [0, 256], sizes = [1, 128], strides = [1, 1]} : vector<1x512xf32> to vector<1x128xf32>
    %112 = math.tanh %111 : vector<1x128xf32>
    %113 = vector.extract_strided_slice %102 {offsets = [0, 384], sizes = [1, 128], strides = [1, 1]} : vector<1x512xf32> to vector<1x128xf32>
    %114 = arith.negf %113 : vector<1x128xf32>
    %115 = math.exp %114 : vector<1x128xf32>
    %cst_29 = arith.constant 1.000000e+00 : f32
    %116 = vector.broadcast %cst_29 : f32 to vector<1x128xf32>
    %117 = arith.addf %116, %115 : vector<1x128xf32>
    %118 = arith.divf %116, %117 : vector<1x128xf32>
    %119 = arith.mulf %110, %93 : vector<1x128xf32>
    %120 = arith.mulf %109, %112 : vector<1x128xf32>
    %121 = arith.addf %119, %120 : vector<1x128xf32>
    %122 = math.tanh %121 : vector<1x128xf32>
    %123 = arith.mulf %118, %122 : vector<1x128xf32>
    %124 = arith.index_cast %c3_i32 : i32 to index
    %c0_30 = arith.constant 0 : index
    %125 = vector.load %arg15[%124, %c0_30] : memref<8x128xf32, #tpu.memory_space<vmem>>, vector<1x128xf32>
    tpu.vector_store %arg15[%124, %c0_30], %123 {strides = array<i32>} : memref<8x128xf32, #tpu.memory_space<vmem>>, vector<1x128xf32>,
    %c4_i32 = arith.constant 4 : i32
    %126 = arith.index_cast %c4_i32 : i32 to index
    %c0_31 = arith.constant 0 : index
    %127 = vector.load %arg16[%126, %c0_31] : memref<8x512xf32, #tpu.memory_space<vmem>>, vector<1x512xf32>
    %128 = arith.truncf %123 : vector<1x128xf32> to vector<1x128xbf16>
    %cst_32 = arith.constant dense<0.000000e+00> : vector<1x512xf32>
    %129 = tpu.matmul %128, %11, %cst_32 {dimension_numbers = #tpu.dot_dimension_numbers<[1], [0], [0], [1], [0, 0, 1, 1], [], []>} : vector<1x128xbf16>, vector<128x512xbf16>, vector<1x512xf32> -> vector<1x512xf32>
    %130 = arith.addf %127, %129 : vector<1x512xf32>
    %131 = vector.extract_strided_slice %130 {offsets = [0, 0], sizes = [1, 256], strides = [1, 1]} : vector<1x512xf32> to vector<1x256xf32>
    %132 = arith.negf %131 : vector<1x256xf32>
    %133 = math.exp %132 : vector<1x256xf32>
    %cst_33 = arith.constant 1.000000e+00 : f32
    %134 = vector.broadcast %cst_33 : f32 to vector<1x256xf32>
    %135 = arith.addf %134, %133 : vector<1x256xf32>
    %136 = arith.divf %134, %135 : vector<1x256xf32>
    %137 = vector.extract_strided_slice %136 {offsets = [0, 0], sizes = [1, 128], strides = [1, 1]} : vector<1x256xf32> to vector<1x128xf32>
    %138 = vector.extract_strided_slice %136 {offsets = [0, 128], sizes = [1, 128], strides = [1, 1]} : vector<1x256xf32> to vector<1x128xf32>
    %139 = vector.extract_strided_slice %130 {offsets = [0, 256], sizes = [1, 128], strides = [1, 1]} : vector<1x512xf32> to vector<1x128xf32>
    %140 = math.tanh %139 : vector<1x128xf32>
    %141 = vector.extract_strided_slice %130 {offsets = [0, 384], sizes = [1, 128], strides = [1, 1]} : vector<1x512xf32> to vector<1x128xf32>
    %142 = arith.negf %141 : vector<1x128xf32>
    %143 = math.exp %142 : vector<1x128xf32>
    %cst_34 = arith.constant 1.000000e+00 : f32
    %144 = vector.broadcast %cst_34 : f32 to vector<1x128xf32>
    %145 = arith.addf %144, %143 : vector<1x128xf32>
    %146 = arith.divf %144, %145 : vector<1x128xf32>
    %147 = arith.mulf %138, %121 : vector<1x128xf32>
    %148 = arith.mulf %137, %140 : vector<1x128xf32>
    %149 = arith.addf %147, %148 : vector<1x128xf32>
    %150 = math.tanh %149 : vector<1x128xf32>
    %151 = arith.mulf %146, %150 : vector<1x128xf32>
    %152 = arith.index_cast %c4_i32 : i32 to index
    %c0_35 = arith.constant 0 : index
    %153 = vector.load %arg15[%152, %c0_35] : memref<8x128xf32, #tpu.memory_space<vmem>>, vector<1x128xf32>
    tpu.vector_store %arg15[%152, %c0_35], %151 {strides = array<i32>} : memref<8x128xf32, #tpu.memory_space<vmem>>, vector<1x128xf32>,
    %c5_i32 = arith.constant 5 : i32
    %154 = arith.index_cast %c5_i32 : i32 to index
    %c0_36 = arith.constant 0 : index
    %155 = vector.load %arg16[%154, %c0_36] : memref<8x512xf32, #tpu.memory_space<vmem>>, vector<1x512xf32>
    %156 = arith.truncf %151 : vector<1x128xf32> to vector<1x128xbf16>
    %cst_37 = arith.constant dense<0.000000e+00> : vector<1x512xf32>
    %157 = tpu.matmul %156, %11, %cst_37 {dimension_numbers = #tpu.dot_dimension_numbers<[1], [0], [0], [1], [0, 0, 1, 1], [], []>} : vector<1x128xbf16>, vector<128x512xbf16>, vector<1x512xf32> -> vector<1x512xf32>
    %158 = arith.addf %155, %157 : vector<1x512xf32>
    %159 = vector.extract_strided_slice %158 {offsets = [0, 0], sizes = [1, 256], strides = [1, 1]} : vector<1x512xf32> to vector<1x256xf32>
    %160 = arith.negf %159 : vector<1x256xf32>
    %161 = math.exp %160 : vector<1x256xf32>
    %cst_38 = arith.constant 1.000000e+00 : f32
    %162 = vector.broadcast %cst_38 : f32 to vector<1x256xf32>
    %163 = arith.addf %162, %161 : vector<1x256xf32>
    %164 = arith.divf %162, %163 : vector<1x256xf32>
    %165 = vector.extract_strided_slice %164 {offsets = [0, 0], sizes = [1, 128], strides = [1, 1]} : vector<1x256xf32> to vector<1x128xf32>
    %166 = vector.extract_strided_slice %164 {offsets = [0, 128], sizes = [1, 128], strides = [1, 1]} : vector<1x256xf32> to vector<1x128xf32>
    %167 = vector.extract_strided_slice %158 {offsets = [0, 256], sizes = [1, 128], strides = [1, 1]} : vector<1x512xf32> to vector<1x128xf32>
    %168 = math.tanh %167 : vector<1x128xf32>
    %169 = vector.extract_strided_slice %158 {offsets = [0, 384], sizes = [1, 128], strides = [1, 1]} : vector<1x512xf32> to vector<1x128xf32>
    %170 = arith.negf %169 : vector<1x128xf32>
    %171 = math.exp %170 : vector<1x128xf32>
    %cst_39 = arith.constant 1.000000e+00 : f32
    %172 = vector.broadcast %cst_39 : f32 to vector<1x128xf32>
    %173 = arith.addf %172, %171 : vector<1x128xf32>
    %174 = arith.divf %172, %173 : vector<1x128xf32>
    %175 = arith.mulf %166, %149 : vector<1x128xf32>
    %176 = arith.mulf %165, %168 : vector<1x128xf32>
    %177 = arith.addf %175, %176 : vector<1x128xf32>
    %178 = math.tanh %177 : vector<1x128xf32>
    %179 = arith.mulf %174, %178 : vector<1x128xf32>
    %180 = arith.index_cast %c5_i32 : i32 to index
    %c0_40 = arith.constant 0 : index
    %181 = vector.load %arg15[%180, %c0_40] : memref<8x128xf32, #tpu.memory_space<vmem>>, vector<1x128xf32>
    tpu.vector_store %arg15[%180, %c0_40], %179 {strides = array<i32>} : memref<8x128xf32, #tpu.memory_space<vmem>>, vector<1x128xf32>,
    %c6_i32 = arith.constant 6 : i32
    %182 = arith.index_cast %c6_i32 : i32 to index
    %c0_41 = arith.constant 0 : index
    %183 = vector.load %arg16[%182, %c0_41] : memref<8x512xf32, #tpu.memory_space<vmem>>, vector<1x512xf32>
    %184 = arith.truncf %179 : vector<1x128xf32> to vector<1x128xbf16>
    %cst_42 = arith.constant dense<0.000000e+00> : vector<1x512xf32>
    %185 = tpu.matmul %184, %11, %cst_42 {dimension_numbers = #tpu.dot_dimension_numbers<[1], [0], [0], [1], [0, 0, 1, 1], [], []>} : vector<1x128xbf16>, vector<128x512xbf16>, vector<1x512xf32> -> vector<1x512xf32>
    %186 = arith.addf %183, %185 : vector<1x512xf32>
    %187 = vector.extract_strided_slice %186 {offsets = [0, 0], sizes = [1, 256], strides = [1, 1]} : vector<1x512xf32> to vector<1x256xf32>
    %188 = arith.negf %187 : vector<1x256xf32>
    %189 = math.exp %188 : vector<1x256xf32>
    %cst_43 = arith.constant 1.000000e+00 : f32
    %190 = vector.broadcast %cst_43 : f32 to vector<1x256xf32>
    %191 = arith.addf %190, %189 : vector<1x256xf32>
    %192 = arith.divf %190, %191 : vector<1x256xf32>
    %193 = vector.extract_strided_slice %192 {offsets = [0, 0], sizes = [1, 128], strides = [1, 1]} : vector<1x256xf32> to vector<1x128xf32>
    %194 = vector.extract_strided_slice %192 {offsets = [0, 128], sizes = [1, 128], strides = [1, 1]} : vector<1x256xf32> to vector<1x128xf32>
    %195 = vector.extract_strided_slice %186 {offsets = [0, 256], sizes = [1, 128], strides = [1, 1]} : vector<1x512xf32> to vector<1x128xf32>
    %196 = math.tanh %195 : vector<1x128xf32>
    %197 = vector.extract_strided_slice %186 {offsets = [0, 384], sizes = [1, 128], strides = [1, 1]} : vector<1x512xf32> to vector<1x128xf32>
    %198 = arith.negf %197 : vector<1x128xf32>
    %199 = math.exp %198 : vector<1x128xf32>
    %cst_44 = arith.constant 1.000000e+00 : f32
    %200 = vector.broadcast %cst_44 : f32 to vector<1x128xf32>
    %201 = arith.addf %200, %199 : vector<1x128xf32>
    %202 = arith.divf %200, %201 : vector<1x128xf32>
    %203 = arith.mulf %194, %177 : vector<1x128xf32>
    %204 = arith.mulf %193, %196 : vector<1x128xf32>
    %205 = arith.addf %203, %204 : vector<1x128xf32>
    %206 = math.tanh %205 : vector<1x128xf32>
    %207 = arith.mulf %202, %206 : vector<1x128xf32>
    %208 = arith.index_cast %c6_i32 : i32 to index
    %c0_45 = arith.constant 0 : index
    %209 = vector.load %arg15[%208, %c0_45] : memref<8x128xf32, #tpu.memory_space<vmem>>, vector<1x128xf32>
    tpu.vector_store %arg15[%208, %c0_45], %207 {strides = array<i32>} : memref<8x128xf32, #tpu.memory_space<vmem>>, vector<1x128xf32>,
    %c7_i32 = arith.constant 7 : i32
    %210 = arith.index_cast %c7_i32 : i32 to index
    %c0_46 = arith.constant 0 : index
    %211 = vector.load %arg16[%210, %c0_46] : memref<8x512xf32, #tpu.memory_space<vmem>>, vector<1x512xf32>
    %212 = arith.truncf %207 : vector<1x128xf32> to vector<1x128xbf16>
    %cst_47 = arith.constant dense<0.000000e+00> : vector<1x512xf32>
    %213 = tpu.matmul %212, %11, %cst_47 {dimension_numbers = #tpu.dot_dimension_numbers<[1], [0], [0], [1], [0, 0, 1, 1], [], []>} : vector<1x128xbf16>, vector<128x512xbf16>, vector<1x512xf32> -> vector<1x512xf32>
    %214 = arith.addf %211, %213 : vector<1x512xf32>
    %215 = vector.extract_strided_slice %214 {offsets = [0, 0], sizes = [1, 256], strides = [1, 1]} : vector<1x512xf32> to vector<1x256xf32>
    %216 = arith.negf %215 : vector<1x256xf32>
    %217 = math.exp %216 : vector<1x256xf32>
    %cst_48 = arith.constant 1.000000e+00 : f32
    %218 = vector.broadcast %cst_48 : f32 to vector<1x256xf32>
    %219 = arith.addf %218, %217 : vector<1x256xf32>
    %220 = arith.divf %218, %219 : vector<1x256xf32>
    %221 = vector.extract_strided_slice %220 {offsets = [0, 0], sizes = [1, 128], strides = [1, 1]} : vector<1x256xf32> to vector<1x128xf32>
    %222 = vector.extract_strided_slice %220 {offsets = [0, 128], sizes = [1, 128], strides = [1, 1]} : vector<1x256xf32> to vector<1x128xf32>
    %223 = vector.extract_strided_slice %214 {offsets = [0, 256], sizes = [1, 128], strides = [1, 1]} : vector<1x512xf32> to vector<1x128xf32>
    %224 = math.tanh %223 : vector<1x128xf32>
    %225 = vector.extract_strided_slice %214 {offsets = [0, 384], sizes = [1, 128], strides = [1, 1]} : vector<1x512xf32> to vector<1x128xf32>
    %226 = arith.negf %225 : vector<1x128xf32>
    %227 = math.exp %226 : vector<1x128xf32>
    %cst_49 = arith.constant 1.000000e+00 : f32
    %228 = vector.broadcast %cst_49 : f32 to vector<1x128xf32>
    %229 = arith.addf %228, %227 : vector<1x128xf32>
    %230 = arith.divf %228, %229 : vector<1x128xf32>
    %231 = arith.mulf %222, %205 : vector<1x128xf32>
    %232 = arith.mulf %221, %224 : vector<1x128xf32>
    %233 = arith.addf %231, %232 : vector<1x128xf32>
    %234 = math.tanh %233 : vector<1x128xf32>
    %235 = arith.mulf %230, %234 : vector<1x128xf32>
    %236 = arith.index_cast %c7_i32 : i32 to index
    %c0_50 = arith.constant 0 : index
    %237 = vector.load %arg15[%236, %c0_50] : memref<8x128xf32, #tpu.memory_space<vmem>>, vector<1x128xf32>
    tpu.vector_store %arg15[%236, %c0_50], %235 {strides = array<i32>} : memref<8x128xf32, #tpu.memory_space<vmem>>, vector<1x128xf32>,
    %c8_i32 = arith.constant 8 : i32
    %c0_51 = arith.constant 0 : index
    %c0_52 = arith.constant 0 : index
    %238 = vector.load %arg15[%c0_51, %c0_52] : memref<8x128xf32, #tpu.memory_space<vmem>>, vector<8x128xf32>
    %239 = arith.truncf %5 : vector<8x128xf32> to vector<8x128xbf16>
    %240 = arith.truncf %4 : vector<8x128xf32> to vector<8x128xbf16>
    %cst_53 = arith.constant dense<0.000000e+00> : vector<8x8xf32>
    %241 = tpu.matmul %239, %240, %cst_53 {dimension_numbers = #tpu.dot_dimension_numbers<[1], [1], [0], [0], [0, 0, 1, 0], [], []>} : vector<8x128xbf16>, vector<8x128xbf16>, vector<8x8xf32> -> vector<8x8xf32>
    %cst_54 = arith.constant 6.000000e-02 : f32
    %242 = vector.broadcast %cst_54 : f32 to vector<8x8xf32>
    %243 = arith.mulf %241, %242 : vector<8x8xf32>
    %cst_55 = arith.constant dense<0xFF800000> : vector<8xf32>
    %244 = vector.multi_reduction <maximumf>, %243, %cst_55 [1] : vector<8x8xf32> to vector<8xf32>
    %245 = vector.shape_cast %244 : vector<8xf32> to vector<8x1xf32>
    %246 = vector.broadcast %245 : vector<8x1xf32> to vector<8x8xf32>
    %247 = arith.subf %243, %246 : vector<8x8xf32>
    %248 = math.exp %247 : vector<8x8xf32>
    %cst_56 = arith.constant dense<0.000000e+00> : vector<8xf32>
    %249 = vector.multi_reduction <add>, %248, %cst_56 [1] : vector<8x8xf32> to vector<8xf32>
    %250 = vector.shape_cast %249 : vector<8xf32> to vector<8x1xf32>
    %251 = tpu.reciprocal %250 {approx = true} : vector<8x1xf32> -> vector<8x1xf32>
    %252 = vector.broadcast %251 : vector<8x1xf32> to vector<8x8xf32>
    %253 = arith.mulf %248, %252 : vector<8x8xf32>
    %cst_57 = arith.constant 0.000000e+00 : f32
    %254 = vector.broadcast %cst_57 : f32 to vector<8x128xf32>
    %c0_58 = arith.constant 0 : index
    %c0_59 = arith.constant 0 : index
    %255 = vector.load %arg14[%c0_58, %c0_59] : memref<8x128xf32, #tpu.memory_space<vmem>>, vector<8x128xf32>
    tpu.vector_store %arg14[%c0_58, %c0_59], %254 {strides = array<i32>} : memref<8x128xf32, #tpu.memory_space<vmem>>, vector<8x128xf32>,
    %c0_60 = arith.constant 0 : index
    %c0_61 = arith.constant 0 : index
    %256 = vector.load %arg14[%c0_60, %c0_61] : memref<8x128xf32, #tpu.memory_space<vmem>>, vector<8x8xf32>
    tpu.vector_store %arg14[%c0_60, %c0_61], %253 {strides = array<i32>} : memref<8x128xf32, #tpu.memory_space<vmem>>, vector<8x8xf32>,
    %257 = arith.truncf %253 : vector<8x8xf32> to vector<8x8xbf16>
    %258 = arith.truncf %238 : vector<8x128xf32> to vector<8x128xbf16>
    %cst_62 = arith.constant dense<0.000000e+00> : vector<8x128xf32>
    %259 = tpu.matmul %257, %258, %cst_62 {dimension_numbers = #tpu.dot_dimension_numbers<[0], [0], [1], [1], [0, 1, 1, 1], [], []>} : vector<8x8xbf16>, vector<8x128xbf16>, vector<8x128xf32> -> vector<8x128xf32>
    %260 = arith.truncf %259 : vector<8x128xf32> to vector<8x128xbf16>
    %c0_63 = arith.constant 0 : index
    %c0_64 = arith.constant 0 : index
    %261 = vector.load %arg4[%c0_63, %c0_64] : memref<128x128xbf16, #tpu.memory_space<vmem>>, vector<128x128xbf16>
    %cst_65 = arith.constant dense<0.000000e+00> : vector<8x128xf32>
    %262 = tpu.matmul %260, %261, %cst_65 {dimension_numbers = #tpu.dot_dimension_numbers<[1], [0], [0], [1], [0, 0, 1, 1], [], []>} : vector<8x128xbf16>, vector<128x128xbf16>, vector<8x128xf32> -> vector<8x128xf32>
    %263 = arith.addf %262, %0 : vector<8x128xf32>
    %c0_66 = arith.constant 0 : index
    %c0_67 = arith.constant 0 : index
    %264 = vector.load %arg5[%c0_66, %c0_67] : memref<1x128xf32, #tpu.memory_space<vmem>>, vector<1x128xf32>
    %c0_68 = arith.constant 0 : index
    %c0_69 = arith.constant 0 : index
    %265 = vector.load %arg6[%c0_68, %c0_69] : memref<1x128xf32, #tpu.memory_space<vmem>>, vector<1x128xf32>
    %cst_70 = arith.constant dense<0.000000e+00> : vector<8xf32>
    %266 = vector.multi_reduction <add>, %263, %cst_70 [1] : vector<8x128xf32> to vector<8xf32>
    %267 = vector.shape_cast %266 : vector<8xf32> to vector<8x1xf32>
    %cst_71 = arith.constant 1.280000e+02 : f32
    %268 = vector.broadcast %cst_71 : f32 to vector<8x1xf32>
    %269 = arith.divf %267, %268 : vector<8x1xf32>
    %270 = vector.broadcast %269 : vector<8x1xf32> to vector<8x128xf32>
    %271 = arith.subf %263, %270 : vector<8x128xf32>
    %272 = arith.mulf %271, %271 : vector<8x128xf32>
    %cst_72 = arith.constant dense<0.000000e+00> : vector<8xf32>
    %273 = vector.multi_reduction <add>, %272, %cst_72 [1] : vector<8x128xf32> to vector<8xf32>
    %274 = vector.shape_cast %273 : vector<8xf32> to vector<8x1xf32>
    %cst_73 = arith.constant 1.270000e+02 : f32
    %275 = vector.broadcast %cst_73 : f32 to vector<8x1xf32>
    %276 = arith.divf %274, %275 : vector<8x1xf32>
    %277 = math.sqrt %276 : vector<8x1xf32>
    %cst_74 = arith.constant 9.99999997E-7 : f32
    %278 = vector.broadcast %cst_74 : f32 to vector<8x1xf32>
    %279 = arith.addf %277, %278 : vector<8x1xf32>
    %280 = tpu.reciprocal %279 {approx = true} : vector<8x1xf32> -> vector<8x1xf32>
    %281 = vector.broadcast %269 : vector<8x1xf32> to vector<8x128xf32>
    %282 = arith.subf %263, %281 : vector<8x128xf32>
    %283 = vector.broadcast %264 : vector<1x128xf32> to vector<8x128xf32>
    %284 = arith.mulf %283, %282 : vector<8x128xf32>
    %285 = vector.broadcast %280 : vector<8x1xf32> to vector<8x128xf32>
    %286 = arith.mulf %284, %285 : vector<8x128xf32>
    %287 = vector.broadcast %265 : vector<1x128xf32> to vector<8x128xf32>
    %288 = arith.addf %286, %287 : vector<8x128xf32>
    %289 = arith.truncf %288 : vector<8x128xf32> to vector<8x128xbf16>
    %c0_75 = arith.constant 0 : index
    %c0_76 = arith.constant 0 : index
    %290 = vector.load %arg7[%c0_75, %c0_76] : memref<128x128xbf16, #tpu.memory_space<vmem>>, vector<128x128xbf16>
    %cst_77 = arith.constant dense<0.000000e+00> : vector<8x128xf32>
    %291 = tpu.matmul %289, %290, %cst_77 {dimension_numbers = #tpu.dot_dimension_numbers<[1], [0], [0], [1], [0, 0, 1, 1], [], []>} : vector<8x128xbf16>, vector<128x128xbf16>, vector<8x128xf32> -> vector<8x128xf32>
    %c0_78 = arith.constant 0 : index
    %c0_79 = arith.constant 0 : index
    %292 = vector.load %arg8[%c0_78, %c0_79] : memref<1x128xf32, #tpu.memory_space<vmem>>, vector<1x128xf32>
    %293 = vector.broadcast %292 : vector<1x128xf32> to vector<8x128xf32>
    %294 = arith.addf %291, %293 : vector<8x128xf32>
    %cst_80 = arith.constant 0.000000e+00 : f32
    %295 = vector.broadcast %cst_80 : f32 to vector<8x128xf32>
    %296 = arith.maximumf %294, %295 : vector<8x128xf32>
    %c0_81 = arith.constant 0 : index
    %c0_82 = arith.constant 0 : index
    %297 = vector.load %arg9[%c0_81, %c0_82] : memref<1x128xf32, #tpu.memory_space<vmem>>, vector<1x128xf32>
    %c0_83 = arith.constant 0 : index
    %c0_84 = arith.constant 0 : index
    %298 = vector.load %arg10[%c0_83, %c0_84] : memref<1x128xf32, #tpu.memory_space<vmem>>, vector<1x128xf32>
    %cst_85 = arith.constant dense<0.000000e+00> : vector<8xf32>
    %299 = vector.multi_reduction <add>, %296, %cst_85 [1] : vector<8x128xf32> to vector<8xf32>
    %300 = vector.shape_cast %299 : vector<8xf32> to vector<8x1xf32>
    %cst_86 = arith.constant 1.280000e+02 : f32
    %301 = vector.broadcast %cst_86 : f32 to vector<8x1xf32>
    %302 = arith.divf %300, %301 : vector<8x1xf32>
    %303 = vector.broadcast %302 : vector<8x1xf32> to vector<8x128xf32>
    %304 = arith.subf %296, %303 : vector<8x128xf32>
    %305 = arith.mulf %304, %304 : vector<8x128xf32>
    %cst_87 = arith.constant dense<0.000000e+00> : vector<8xf32>
    %306 = vector.multi_reduction <add>, %305, %cst_87 [1] : vector<8x128xf32> to vector<8xf32>
    %307 = vector.shape_cast %306 : vector<8xf32> to vector<8x1xf32>
    %cst_88 = arith.constant 1.270000e+02 : f32
    %308 = vector.broadcast %cst_88 : f32 to vector<8x1xf32>
    %309 = arith.divf %307, %308 : vector<8x1xf32>
    %310 = math.sqrt %309 : vector<8x1xf32>
    %cst_89 = arith.constant 9.99999997E-7 : f32
    %311 = vector.broadcast %cst_89 : f32 to vector<8x1xf32>
    %312 = arith.addf %310, %311 : vector<8x1xf32>
    %313 = tpu.reciprocal %312 {approx = true} : vector<8x1xf32> -> vector<8x1xf32>
    %314 = vector.broadcast %302 : vector<8x1xf32> to vector<8x128xf32>
    %315 = arith.subf %296, %314 : vector<8x128xf32>
    %316 = vector.broadcast %297 : vector<1x128xf32> to vector<8x128xf32>
    %317 = arith.mulf %316, %315 : vector<8x128xf32>
    %318 = vector.broadcast %313 : vector<8x1xf32> to vector<8x128xf32>
    %319 = arith.mulf %317, %318 : vector<8x128xf32>
    %320 = vector.broadcast %298 : vector<1x128xf32> to vector<8x128xf32>
    %321 = arith.addf %319, %320 : vector<8x128xf32>
    %322 = arith.truncf %321 : vector<8x128xf32> to vector<8x128xbf16>
    %c0_90 = arith.constant 0 : index
    %c0_91 = arith.constant 0 : index
    %323 = vector.load %arg11[%c0_90, %c0_91] : memref<128x128xbf16, #tpu.memory_space<vmem>>, vector<128x128xbf16>
    %cst_92 = arith.constant dense<0.000000e+00> : vector<8x128xf32>
    %324 = tpu.matmul %322, %323, %cst_92 {dimension_numbers = #tpu.dot_dimension_numbers<[1], [0], [0], [1], [0, 0, 1, 1], [], []>} : vector<8x128xbf16>, vector<128x128xbf16>, vector<8x128xf32> -> vector<8x128xf32>
    %c0_93 = arith.constant 0 : index
    %c0_94 = arith.constant 0 : index
    %325 = vector.load %arg12[%c0_93, %c0_94] : memref<1x128xf32, #tpu.memory_space<vmem>>, vector<1x128xf32>
    %326 = vector.broadcast %325 : vector<1x128xf32> to vector<8x128xf32>
    %327 = arith.addf %324, %326 : vector<8x128xf32>
    %328 = arith.negf %327 : vector<8x128xf32>
    %329 = math.exp %328 : vector<8x128xf32>
    %cst_95 = arith.constant 1.000000e+00 : f32
    %330 = vector.broadcast %cst_95 : f32 to vector<8x128xf32>
    %331 = arith.addf %330, %329 : vector<8x128xf32>
    %332 = arith.divf %330, %331 : vector<8x128xf32>
    %c0_96 = arith.constant 0 : index
    %c0_97 = arith.constant 0 : index
    %333 = vector.load %arg13[%c0_96, %c0_97] : memref<8x128xf32, #tpu.memory_space<vmem>>, vector<8x128xf32>
    tpu.vector_store %arg13[%c0_96, %c0_97], %332 {strides = array<i32>} : memref<8x128xf32, #tpu.memory_space<vmem>>, vector<8x128xf32>,
    return
  }
}

</mosaic_0001>

<llo_original>
// kernel: tpu_custom_call.1
$region0: #{tpu_custom_call.1}
  #allocation0 [shape = 'u32[]', space=smem, size = 0x4, offset = 0x4, fixed_abs, tag = 'smem constant byte address 0x4 - core index']
  #allocation1 [shape = 'u32[144,128]{1,0:T(1,128)}', space=vmem, size = 0x12000, scoped, tag = 'internal scratch']
  #allocation2 [shape = 'f32[8,128]{1,0:T(8,128)}', space=vmem, size = 0x1000, scoped, tag = 'scratch operand']
  #allocation3 [shape = 'f32[8,512]{1,0:T(8,128)}', space=vmem, size = 0x4000, scoped, tag = 'scratch operand']
  %s0 = inlined_call_operand.hbm [shape: f32[8,128], index: 0, kind: input, shape index: {}]
  %s1 = inlined_call_operand.hbm [shape: bf16[128,768], index: 1, kind: input, shape index: {}]
  %s2 = inlined_call_operand.hbm [shape: bf16[128,512], index: 2, kind: input, shape index: {}]
  %s3 = inlined_call_operand.vmem [shape: f32[1,512], index: 3, kind: input, shape index: {}]
  %s4 = inlined_call_operand.hbm [shape: bf16[128,128], index: 4, kind: input, shape index: {}]
  %s5 = inlined_call_operand.vmem [shape: f32[1,128], index: 5, kind: input, shape index: {}]
  %s6 = inlined_call_operand.vmem [shape: f32[1,128], index: 6, kind: input, shape index: {}]
  %s7 = inlined_call_operand.hbm [shape: bf16[128,128], index: 7, kind: input, shape index: {}]
  %s8 = inlined_call_operand.vmem [shape: f32[1,128], index: 8, kind: input, shape index: {}]
  %s9 = inlined_call_operand.vmem [shape: f32[1,128], index: 9, kind: input, shape index: {}]
  %s10 = inlined_call_operand.vmem [shape: f32[1,128], index: 10, kind: input, shape index: {}]
  %s11 = inlined_call_operand.hbm [shape: bf16[128,128], index: 11, kind: input, shape index: {}]
  %s12 = inlined_call_operand.vmem [shape: f32[1,128], index: 12, kind: input, shape index: {}]
  %s13 = inlined_call_operand.hbm [shape: f32[8,128], index: 13, kind: output, shape index: {0}]
  %s14 = inlined_call_operand.hbm [shape: f32[8,128], index: 14, kind: output, shape index: {1}]
  %15 = xla_tuple %s13, %s14
  %s16 = sld [smem:[#allocation0]]
  $region94: #{tpu_custom_call.1} parent=0
    _
  %s18 = ssub.s32 1, %s16
  %s19 = scalar_select 0, %s18, %s16
  $region1: #{tpu_custom_call.1} parent=0
    #allocation4 [shape = 'u8[4096]{0}', space=vmem, size = 0x1000, scoped, tag = 'input window, operand 0, single buffered']
    #allocation5 [shape = 's32[1]{0}', space=sflag, size = 0x4, scoped, tag = 'scoped memory for tpu_custom_call.1']
    #allocation6 [shape = 's32[1]{0}', space=sflag, size = 0x4, scoped, tag = 'scoped memory for tpu_custom_call.1']
    #allocation7 [shape = 'u8[196608]{0}', space=vmem, size = 0x30000, scoped, tag = 'input window, operand 1, single buffered']
    #allocation8 [shape = 's32[1]{0}', space=sflag, size = 0x4, scoped, tag = 'scoped memory for tpu_custom_call.1']
    #allocation9 [shape = 'u8[131072]{0}', space=vmem, size = 0x20000, scoped, tag = 'input window, operand 2, single buffered']
    #allocation10 [shape = 'u8[32768]{0}', space=vmem, size = 0x8000, scoped, tag = 'input window, operand 4, single buffered']
    #allocation11 [shape = 's32[1]{0}', space=sflag, size = 0x4, scoped, tag = 'scoped memory for tpu_custom_call.1']
    #allocation12 [shape = 'u8[32768]{0}', space=vmem, size = 0x8000, scoped, tag = 'input window, operand 7, single buffered']
    #allocation13 [shape = 'u8[32768]{0}', space=vmem, size = 0x8000, scoped, tag = 'input window, operand 11, single buffered']
    #allocation14 [shape = 's32[1]{0}', space=sflag, size = 0x4, scoped, tag = 'scoped memory for tpu_custom_call.1']
    #allocation15 [shape = 'u8[4096]{0}', space=vmem, size = 0x1000, scoped, tag = 'output window, operand 0, single buffered']
    #allocation16 [shape = 'u8[4096]{0}', space=vmem, size = 0x1000, scoped, tag = 'output window, operand 1, single buffered']
    #allocation17 [shape = 's32[1]{0}', space=sflag, size = 0x4, scoped, tag = 'scoped memory for tpu_custom_call.1']
    %20 = vsyncpa [#allocation5], 0
    %21 = vsyncpa [#allocation8], 0
    %22 = vsyncpa [#allocation11], 0
    %23 = vsyncpa [#allocation14], 0
    %24 = vsyncpa [#allocation6], 0
    %25 = vsyncpa [#allocation17], 0
    // Predicated region
    $region2: #{tpu_custom_call.1} parent=1 // pred_check
      _
    $region3: #{tpu_custom_call.1} parent=1 // pred_check_branch
      %27 = sbr.rel (0) target = $region5
    $region4: #{tpu_custom_call.1} parent=1 // pred_region
      %s29 = ssub.s32 128, 128
      %30 = vsyncadd [#allocation5], %s29
      %s32 = sshll.u32 [#allocation4], 4
      %s33 = int_to_ptr.vmem [resolvable:$true] %s32
      %35 = dma.hbm_to_vmem [thread:$0]  %s0, 128, %s33, [#allocation5]
    $region5: #{tpu_custom_call.1} parent=1 // pred_fallthru
      _
    // Predicated region
    $region6: #{tpu_custom_call.1} parent=1 // pred_check
      _
    $region7: #{tpu_custom_call.1} parent=1 // pred_check_branch
      %37 = sbr.rel (0) target = $region9
    $region8: #{tpu_custom_call.1} parent=1 // pred_region
      %s39 = ssub.s32 6144, 6144
      %40 = vsyncadd [#allocation8], %s39
      %s41 = sshll.u32 [#allocation7], 4
      %s42 = int_to_ptr.vmem [resolvable:$true] %s41
      %47 = dma.hbm_to_vmem [thread:$0]  %s1, 6144, %s42, [#allocation8], 384, 384, 24
    $region9: #{tpu_custom_call.1} parent=1 // pred_fallthru
      _
    // Predicated region
    $region10: #{tpu_custom_call.1} parent=1 // pred_check
      _
    $region11: #{tpu_custom_call.1} parent=1 // pred_check_branch
      %49 = sbr.rel (0) target = $region13
    $region12: #{tpu_custom_call.1} parent=1 // pred_region
      %s51 = ssub.s32 4096, 4096
      %52 = vsyncadd [#allocation8], %s51
      %s53 = sshll.u32 [#allocation9], 4
      %s54 = int_to_ptr.vmem [resolvable:$true] %s53
      %59 = dma.hbm_to_vmem [thread:$0]  %s2, 4096, %s54, [#allocation8], 256, 256, 16
    $region13: #{tpu_custom_call.1} parent=1 // pred_fallthru
      _
    // Predicated region
    $region14: #{tpu_custom_call.1} parent=1 // pred_check
      _
    $region15: #{tpu_custom_call.1} parent=1 // pred_check_branch
      %61 = sbr.rel (0) target = $region17
    $region16: #{tpu_custom_call.1} parent=1 // pred_region
      _
    $region17: #{tpu_custom_call.1} parent=1 // pred_fallthru
      _
    // Predicated region
    $region18: #{tpu_custom_call.1} parent=1 // pred_check
      _
    $region19: #{tpu_custom_call.1} parent=1 // pred_check_branch
      %63 = sbr.rel (0) target = $region21
    $region20: #{tpu_custom_call.1} parent=1 // pred_region
      %s65 = ssub.s32 1024, 1024
      %66 = vsyncadd [#allocation11], %s65
      %s67 = sshll.u32 [#allocation10], 4
      %s68 = int_to_ptr.vmem [resolvable:$true] %s67
      %73 = dma.hbm_to_vmem [thread:$0]  %s4, 1024, %s68, [#allocation11], 64, 64, 4
    $region21: #{tpu_custom_call.1} parent=1 // pred_fallthru
      _
    // Predicated region
    $region22: #{tpu_custom_call.1} parent=1 // pred_check
      _
    $region23: #{tpu_custom_call.1} parent=1 // pred_check_branch
      %75 = sbr.rel (0) target = $region25
    $region24: #{tpu_custom_call.1} parent=1 // pred_region
      _
    $region25: #{tpu_custom_call.1} parent=1 // pred_fallthru
      _
    // Predicated region
    $region26: #{tpu_custom_call.1} parent=1 // pred_check
      _
    $region27: #{tpu_custom_call.1} parent=1 // pred_check_branch
      %77 = sbr.rel (0) target = $region29
    $region28: #{tpu_custom_call.1} parent=1 // pred_region
      _
    $region29: #{tpu_custom_call.1} parent=1 // pred_fallthru
      _
    // Predicated region
    $region30: #{tpu_custom_call.1} parent=1 // pred_check
      _
    $region31: #{tpu_custom_call.1} parent=1 // pred_check_branch
      %79 = sbr.rel (0) target = $region33
    $region32: #{tpu_custom_call.1} parent=1 // pred_region
      %s81 = ssub.s32 1024, 1024
      %82 = vsyncadd [#allocation11], %s81
      %s83 = sshll.u32 [#allocation12], 4
      %s84 = int_to_ptr.vmem [resolvable:$true] %s83
      %89 = dma.hbm_to_vmem [thread:$0]  %s7, 1024, %s84, [#allocation11], 64, 64, 4
    $region33: #{tpu_custom_call.1} parent=1 // pred_fallthru
      _
    // Predicated region
    $region34: #{tpu_custom_call.1} parent=1 // pred_check
      _
    $region35: #{tpu_custom_call.1} parent=1 // pred_check_branch
      %91 = sbr.rel (0) target = $region37
    $region36: #{tpu_custom_call.1} parent=1 // pred_region
      _
    $region37: #{tpu_custom_call.1} parent=1 // pred_fallthru
      _
    // Predicated region
    $region38: #{tpu_custom_call.1} parent=1 // pred_check
      _
    $region39: #{tpu_custom_call.1} parent=1 // pred_check_branch
      %93 = sbr.rel (0) target = $region41
    $region40: #{tpu_custom_call.1} parent=1 // pred_region
      _
    $region41: #{tpu_custom_call.1} parent=1 // pred_fallthru
      _
    // Predicated region
    $region42: #{tpu_custom_call.1} parent=1 // pred_check
      _
    $region43: #{tpu_custom_call.1} parent=1 // pred_check_branch
      %95 = sbr.rel (0) target = $region45
    $region44: #{tpu_custom_call.1} parent=1 // pred_region
      _
    $region45: #{tpu_custom_call.1} parent=1 // pred_fallthru
      _
    // Predicated region
    $region46: #{tpu_custom_call.1} parent=1 // pred_check
      _
    $region47: #{tpu_custom_call.1} parent=1 // pred_check_branch
      %97 = sbr.rel (0) target = $region49
    $region48: #{tpu_custom_call.1} parent=1 // pred_region
      %s99 = ssub.s32 1024, 1024
      %100 = vsyncadd [#allocation14], %s99
      %s101 = sshll.u32 [#allocation13], 4
      %s102 = int_to_ptr.vmem [resolvable:$true] %s101
      %107 = dma.hbm_to_vmem [thread:$0]  %s11, 1024, %s102, [#allocation14], 64, 64, 4
    $region49: #{tpu_custom_call.1} parent=1 // pred_fallthru
      _
    // Predicated region
    $region50: #{tpu_custom_call.1} parent=1 // pred_check
      _
    $region51: #{tpu_custom_call.1} parent=1 // pred_check_branch
      %109 = sbr.rel (0) target = $region53
    $region52: #{tpu_custom_call.1} parent=1 // pred_region
      _
    $region53: #{tpu_custom_call.1} parent=1 // pred_fallthru
      _
    // Predicated region
    $region54: #{tpu_custom_call.1} parent=1 // pred_check
      _
    $region55: #{tpu_custom_call.1} parent=1 // pred_check_branch
      %111 = sbr.rel (0) target = $region57
    $region56: #{tpu_custom_call.1} parent=1 // pred_region
      %112 = dma.done [#allocation5], 128
    $region57: #{tpu_custom_call.1} parent=1 // pred_fallthru
      _
    // Predicated region
    $region58: #{tpu_custom_call.1} parent=1 // pred_check
      _
    $region59: #{tpu_custom_call.1} parent=1 // pred_check_branch
      %114 = sbr.rel (0) target = $region61
    $region60: #{tpu_custom_call.1} parent=1 // pred_region
      %115 = dma.done [#allocation8], 6144
    $region61: #{tpu_custom_call.1} parent=1 // pred_fallthru
      _
    // Predicated region
    $region62: #{tpu_custom_call.1} parent=1 // pred_check
      _
    $region63: #{tpu_custom_call.1} parent=1 // pred_check_branch
      %117 = sbr.rel (0) target = $region65
    $region64: #{tpu_custom_call.1} parent=1 // pred_region
      %118 = dma.done [#allocation8], 4096
    $region65: #{tpu_custom_call.1} parent=1 // pred_fallthru
      _
    // Predicated region
    $region66: #{tpu_custom_call.1} parent=1 // pred_check
      _
    $region67: #{tpu_custom_call.1} parent=1 // pred_check_branch
      %120 = sbr.rel (0) target = $region69
    $region68: #{tpu_custom_call.1} parent=1 // pred_region
      %121 = dma.done [#allocation11], 1024
    $region69: #{tpu_custom_call.1} parent=1 // pred_fallthru
      _
    // Predicated region
    $region70: #{tpu_custom_call.1} parent=1 // pred_check
      _
    $region71: #{tpu_custom_call.1} parent=1 // pred_check_branch
      %123 = sbr.rel (0) target = $region73
    $region72: #{tpu_custom_call.1} parent=1 // pred_region
      %124 = dma.done [#allocation11], 1024
    $region73: #{tpu_custom_call.1} parent=1 // pred_fallthru
      _
    // Predicated region
    $region74: #{tpu_custom_call.1} parent=1 // pred_check
      _
    $region75: #{tpu_custom_call.1} parent=1 // pred_check_branch
      %126 = sbr.rel (0) target = $region77
    $region76: #{tpu_custom_call.1} parent=1 // pred_region
      %127 = dma.done [#allocation14], 1024
    $region77: #{tpu_custom_call.1} parent=1 // pred_fallthru
      _
    %v129 = vld [vmem:[#allocation4] sm:$0xff]
    %v130 = vpack.c.bf16 %v129, %v129
    %v131 = vld [vmem:[#allocation7] sm:$0xff]
    %v132 = vld [vmem:[#allocation7 + $0x8] sm:$0xff]
    %v133 = vld [vmem:[#allocation7 + $0x10] sm:$0xff]
    %v134 = vld [vmem:[#allocation7 + $0x18] sm:$0xff]
    %v135 = vld [vmem:[#allocation7 + $0x20] sm:$0xff]
    %v136 = vld [vmem:[#allocation7 + $0x28] sm:$0xff]
    %v137 = vld [vmem:[#allocation7 + $0x30] sm:$0xff]
    %v138 = vld [vmem:[#allocation7 + $0x38] sm:$0xff]
    %v139 = vld [vmem:[#allocation7 + $0x40] sm:$0xff]
    %v140 = vld [vmem:[#allocation7 + $0x48] sm:$0xff]
    %v141 = vld [vmem:[#allocation7 + $0x50] sm:$0xff]
    %v142 = vld [vmem:[#allocation7 + $0x58] sm:$0xff]
    %v143 = vld [vmem:[#allocation7 + $0x60] sm:$0xff]
    %v144 = vld [vmem:[#allocation7 + $0x68] sm:$0xff]
    %v145 = vld [vmem:[#allocation7 + $0x70] sm:$0xff]
    %v146 = vld [vmem:[#allocation7 + $0x78] sm:$0xff]
    %v147 = vld [vmem:[#allocation7 + $0x80] sm:$0xff]
    %v148 = vld [vmem:[#allocation7 + $0x88] sm:$0xff]
    %v149 = vld [vmem:[#allocation7 + $0x90] sm:$0xff]
    %v150 = vld [vmem:[#allocation7 + $0x98] sm:$0xff]
    %v151 = vld [vmem:[#allocation7 + $0xa0] sm:$0xff]
    %v152 = vld [vmem:[#allocation7 + $0xa8] sm:$0xff]
    %v153 = vld [vmem:[#allocation7 + $0xb0] sm:$0xff]
    %v154 = vld [vmem:[#allocation7 + $0xb8] sm:$0xff]
    %v155 = vld [vmem:[#allocation7 + $0xc0] sm:$0xff]
    %v156 = vld [vmem:[#allocation7 + $0xc8] sm:$0xff]
    %v157 = vld [vmem:[#allocation7 + $0xd0] sm:$0xff]
    %v158 = vld [vmem:[#allocation7 + $0xd8] sm:$0xff]
    %v159 = vld [vmem:[#allocation7 + $0xe0] sm:$0xff]
    %v160 = vld [vmem:[#allocation7 + $0xe8] sm:$0xff]
    %v161 = vld [vmem:[#allocation7 + $0xf0] sm:$0xff]
    %v162 = vld [vmem:[#allocation7 + $0xf8] sm:$0xff]
    %v163 = vld [vmem:[#allocation7 + $0x100] sm:$0xff]
    %v164 = vld [vmem:[#allocation7 + $0x108] sm:$0xff]
    %v165 = vld [vmem:[#allocation7 + $0x110] sm:$0xff]
    %v166 = vld [vmem:[#allocation7 + $0x118] sm:$0xff]
    %v167 = vld [vmem:[#allocation7 + $0x120] sm:$0xff]
    %v168 = vld [vmem:[#allocation7 + $0x128] sm:$0xff]
    %v169 = vld [vmem:[#allocation7 + $0x130] sm:$0xff]
    %v170 = vld [vmem:[#allocation7 + $0x138] sm:$0xff]
    %v171 = vld [vmem:[#allocation7 + $0x140] sm:$0xff]
    %v172 = vld [vmem:[#allocation7 + $0x148] sm:$0xff]
    %v173 = vld [vmem:[#allocation7 + $0x150] sm:$0xff]
    %v174 = vld [vmem:[#allocation7 + $0x158] sm:$0xff]
    %v175 = vld [vmem:[#allocation7 + $0x160] sm:$0xff]
    %v176 = vld [vmem:[#allocation7 + $0x168] sm:$0xff]
    %v177 = vld [vmem:[#allocation7 + $0x170] sm:$0xff]
    %v178 = vld [vmem:[#allocation7 + $0x178] sm:$0xff]
    %v227 = vunpack.c.l.b16 %v131
    %v228 = vunpack.c.h.b16 %v131
    %v229 = vunpack.c.l.b16 %v132
    %v230 = vunpack.c.h.b16 %v132
    %v231 = vunpack.c.l.b16 %v133
    %v232 = vunpack.c.h.b16 %v133
    %v233 = vunpack.c.l.b16 %v134
    %v234 = vunpack.c.h.b16 %v134
    %v235 = vunpack.c.l.b16 %v135
    %v236 = vunpack.c.h.b16 %v135
    %v237 = vunpack.c.l.b16 %v136
    %v238 = vunpack.c.h.b16 %v136
    %v239 = vunpack.c.l.b16 %v137
    %v240 = vunpack.c.h.b16 %v137
    %v241 = vunpack.c.l.b16 %v138
    %v242 = vunpack.c.h.b16 %v138
    %v243 = vunpack.c.l.b16 %v139
    %v244 = vunpack.c.h.b16 %v139
    %v245 = vunpack.c.l.b16 %v140
    %v246 = vunpack.c.h.b16 %v140
    %v247 = vunpack.c.l.b16 %v141
    %v248 = vunpack.c.h.b16 %v141
    %v249 = vunpack.c.l.b16 %v142
    %v250 = vunpack.c.h.b16 %v142
    %v251 = vunpack.c.l.b16 %v143
    %v252 = vunpack.c.h.b16 %v143
    %v253 = vunpack.c.l.b16 %v144
    %v254 = vunpack.c.h.b16 %v144
    %v255 = vunpack.c.l.b16 %v145
    %v256 = vunpack.c.h.b16 %v145
    %v257 = vunpack.c.l.b16 %v146
    %v258 = vunpack.c.h.b16 %v146
    %v259 = vunpack.c.l.b16 %v147
    %v260 = vunpack.c.h.b16 %v147
    %v261 = vunpack.c.l.b16 %v148
    %v262 = vunpack.c.h.b16 %v148
    %v263 = vunpack.c.l.b16 %v149
    %v264 = vunpack.c.h.b16 %v149
    %v265 = vunpack.c.l.b16 %v150
    %v266 = vunpack.c.h.b16 %v150
    %v267 = vunpack.c.l.b16 %v151
    %v268 = vunpack.c.h.b16 %v151
    %v269 = vunpack.c.l.b16 %v152
    %v270 = vunpack.c.h.b16 %v152
    %v271 = vunpack.c.l.b16 %v153
    %v272 = vunpack.c.h.b16 %v153
    %v273 = vunpack.c.l.b16 %v154
    %v274 = vunpack.c.h.b16 %v154
    %v275 = vunpack.c.l.b16 %v155
    %v276 = vunpack.c.h.b16 %v155
    %v277 = vunpack.c.l.b16 %v156
    %v278 = vunpack.c.h.b16 %v156
    %v279 = vunpack.c.l.b16 %v157
    %v280 = vunpack.c.h.b16 %v157
    %v281 = vunpack.c.l.b16 %v158
    %v282 = vunpack.c.h.b16 %v158
    %v283 = vunpack.c.l.b16 %v159
    %v284 = vunpack.c.h.b16 %v159
    %v285 = vunpack.c.l.b16 %v160
    %v286 = vunpack.c.h.b16 %v160
    %v287 = vunpack.c.l.b16 %v161
    %v288 = vunpack.c.h.b16 %v161
    %v289 = vunpack.c.l.b16 %v162
    %v290 = vunpack.c.h.b16 %v162
    %v291 = vunpack.c.l.b16 %v163
    %v292 = vunpack.c.h.b16 %v163
    %v293 = vunpack.c.l.b16 %v164
    %v294 = vunpack.c.h.b16 %v164
    %v295 = vunpack.c.l.b16 %v165
    %v296 = vunpack.c.h.b16 %v165
    %v297 = vunpack.c.l.b16 %v166
    %v298 = vunpack.c.h.b16 %v166
    %v299 = vunpack.c.l.b16 %v167
    %v300 = vunpack.c.h.b16 %v167
    %v301 = vunpack.c.l.b16 %v168
    %v302 = vunpack.c.h.b16 %v168
    %v303 = vunpack.c.l.b16 %v169
    %v304 = vunpack.c.h.b16 %v169
    %v305 = vunpack.c.l.b16 %v170
    %v306 = vunpack.c.h.b16 %v170
    %v307 = vunpack.c.l.b16 %v171
    %v308 = vunpack.c.h.b16 %v171
    %v309 = vunpack.c.l.b16 %v172
    %v310 = vunpack.c.h.b16 %v172
    %v311 = vunpack.c.l.b16 %v173
    %v312 = vunpack.c.h.b16 %v173
    %v313 = vunpack.c.l.b16 %v174
    %v314 = vunpack.c.h.b16 %v174
    %v315 = vunpack.c.l.b16 %v175
    %v316 = vunpack.c.h.b16 %v175
    %v317 = vunpack.c.l.b16 %v176
    %v318 = vunpack.c.h.b16 %v176
    %v319 = vunpack.c.l.b16 %v177
    %v320 = vunpack.c.h.b16 %v177
    %v321 = vunpack.c.l.b16 %v178
    %v322 = vunpack.c.h.b16 %v178
    %v323 = vpack.c.b16 %v233, %v227
    %v324 = vpack.c.b16 %v234, %v228
    %v325 = vpack.c.b16 %v235, %v229
    %v326 = vpack.c.b16 %v236, %v230
    %v327 = vpack.c.b16 %v237, %v231
    %v328 = vpack.c.b16 %v238, %v232
    %v329 = vpack.c.b16 %v245, %v239
    %v330 = vpack.c.b16 %v246, %v240
    %v331 = vpack.c.b16 %v247, %v241
    %v332 = vpack.c.b16 %v248, %v242
    %v333 = vpack.c.b16 %v249, %v243
    %v334 = vpack.c.b16 %v250, %v244
    %v335 = vpack.c.b16 %v257, %v251
    %v336 = vpack.c.b16 %v258, %v252
    %v337 = vpack.c.b16 %v259, %v253
    %v338 = vpack.c.b16 %v260, %v254
    %v339 = vpack.c.b16 %v261, %v255
    %v340 = vpack.c.b16 %v262, %v256
    %v341 = vpack.c.b16 %v269, %v263
    %v342 = vpack.c.b16 %v270, %v264
    %v343 = vpack.c.b16 %v271, %v265
    %v344 = vpack.c.b16 %v272, %v266
    %v345 = vpack.c.b16 %v273, %v267
    %v346 = vpack.c.b16 %v274, %v268
    %v347 = vpack.c.b16 %v281, %v275
    %v348 = vpack.c.b16 %v282, %v276
    %v349 = vpack.c.b16 %v283, %v277
    %v350 = vpack.c.b16 %v284, %v278
    %v351 = vpack.c.b16 %v285, %v279
    %v352 = vpack.c.b16 %v286, %v280
    %v353 = vpack.c.b16 %v293, %v287
    %v354 = vpack.c.b16 %v294, %v288
    %v355 = vpack.c.b16 %v295, %v289
    %v356 = vpack.c.b16 %v296, %v290
    %v357 = vpack.c.b16 %v297, %v291
    %v358 = vpack.c.b16 %v298, %v292
    %v359 = vpack.c.b16 %v305, %v299
    %v360 = vpack.c.b16 %v306, %v300
    %v361 = vpack.c.b16 %v307, %v301
    %v362 = vpack.c.b16 %v308, %v302
    %v363 = vpack.c.b16 %v309, %v303
    %v364 = vpack.c.b16 %v310, %v304
    %v365 = vpack.c.b16 %v317, %v311
    %v366 = vpack.c.b16 %v318, %v312
    %v367 = vpack.c.b16 %v319, %v313
    %v368 = vpack.c.b16 %v320, %v314
    %v369 = vpack.c.b16 %v321, %v315
    %v370 = vpack.c.b16 %v322, %v316
    %419 = vmatprep.subr.bf16.mxu0 %v366
    %420 = vmatpush1.bf16.msra.mxu0 %v365
    %421 = vmatprep.subr.bf16.mxu0 %v360
    %422 = vmatpush1.bf16.msra.mxu0 %v359
    %423 = vmatprep.subr.bf16.mxu0 %v354
    %424 = vmatpush1.bf16.msra.mxu0 %v353
    %425 = vmatprep.subr.bf16.mxu0 %v348
    %426 = vmatpush1.bf16.msra.mxu0 %v347
    %427 = vmatprep.subr.bf16.mxu0 %v342
    %428 = vmatpush1.bf16.msra.mxu0 %v341
    %429 = vmatprep.subr.bf16.mxu0 %v336
    %430 = vmatpush1.bf16.msra.mxu0 %v335
    %431 = vmatprep.subr.bf16.mxu0 %v330
    %432 = vmatpush1.bf16.msra.mxu0 %v329
    %433 = vmatprep.subr.bf16.mxu0 %v324
    %434 = vmatpush1.bf16.msra.mxu0 %v323
    %435 = vmatprep.subr.bf16.mxu0 0
    %436 = vmatpush2.bf16.msra.mxu0 0
    %437 = vmatprep.subr.bf16.mxu0 0
    %438 = vmatpush2.bf16.msra.mxu0 0
    %439 = vmatprep.subr.bf16.mxu0 0
    %440 = vmatpush2.bf16.msra.mxu0 0
    %441 = vmatprep.subr.bf16.mxu0 0
    %442 = vmatpush2.bf16.msra.mxu0 0
    %443 = vmatprep.subr.bf16.mxu0 0
    %444 = vmatpush2.bf16.msra.mxu0 0
    %445 = vmatprep.subr.bf16.mxu0 0
    %446 = vmatpush2.bf16.msra.mxu0 0
    %447 = vmatprep.subr.bf16.mxu0 0
    %448 = vmatpush2.bf16.msra.mxu0 0
    %449 = vmatprep.subr.bf16.mxu0 0
    %450 = vmatpush2.bf16.msra.mxu0 0
    %451 = vmatprep.mubr.bf16.mxu0 0
    %452 = vmatmul.mubr.bf16.gmra.mxu0 %v130
    %v453 = vpop.f32.mrf.mxu0
    %v454 = vadd.f32 0.0, %v453
    %v455 = vpop.f32.mrf.mxu0
    %v456 = vadd.f32 0.0, %v455
    %v457 = vpop.f32.mrf.mxu0
    %v458 = vpop.f32.mrf.mxu0
    %459 = vdwg.mxu0
    %460 = vmatprep.subr.bf16.mxu0 %v368
    %461 = vmatpush1.bf16.msra.mxu0 %v367
    %462 = vmatprep.subr.bf16.mxu0 %v362
    %463 = vmatpush1.bf16.msra.mxu0 %v361
    %464 = vmatprep.subr.bf16.mxu0 %v356
    %465 = vmatpush1.bf16.msra.mxu0 %v355
    %466 = vmatprep.subr.bf16.mxu0 %v350
    %467 = vmatpush1.bf16.msra.mxu0 %v349
    %468 = vmatprep.subr.bf16.mxu0 %v344
    %469 = vmatpush1.bf16.msra.mxu0 %v343
    %470 = vmatprep.subr.bf16.mxu0 %v338
    %471 = vmatpush1.bf16.msra.mxu0 %v337
    %472 = vmatprep.subr.bf16.mxu0 %v332
    %473 = vmatpush1.bf16.msra.mxu0 %v331
    %474 = vmatprep.subr.bf16.mxu0 %v326
    %475 = vmatpush1.bf16.msra.mxu0 %v325
    %476 = vmatprep.subr.bf16.mxu0 0
    %477 = vmatpush2.bf16.msra.mxu0 0
    %478 = vmatprep.subr.bf16.mxu0 0
    %479 = vmatpush2.bf16.msra.mxu0 0
    %480 = vmatprep.subr.bf16.mxu0 0
    %481 = vmatpush2.bf16.msra.mxu0 0
    %482 = vmatprep.subr.bf16.mxu0 0
    %483 = vmatpush2.bf16.msra.mxu0 0
    %484 = vmatprep.subr.bf16.mxu0 0
    %485 = vmatpush2.bf16.msra.mxu0 0
    %486 = vmatprep.subr.bf16.mxu0 0
    %487 = vmatpush2.bf16.msra.mxu0 0
    %488 = vmatprep.subr.bf16.mxu0 0
    %489 = vmatpush2.bf16.msra.mxu0 0
    %490 = vmatprep.subr.bf16.mxu0 0
    %491 = vmatpush2.bf16.msra.mxu0 0
    %492 = vmatprep.mubr.bf16.mxu0 0
    %493 = vmatmul.mubr.bf16.gmra.mxu0 %v130
    %v494 = vpop.f32.mrf.mxu0
    %v495 = vadd.f32 0.0, %v494
    %v496 = vpop.f32.mrf.mxu0
    %v497 = vadd.f32 0.0, %v496
    %v498 = vpop.f32.mrf.mxu0
    %v499 = vpop.f32.mrf.mxu0
    %500 = vdwg.mxu0
    %501 = vmatprep.subr.bf16.mxu0 %v370
    %502 = vmatpush1.bf16.msra.mxu0 %v369
    %503 = vmatprep.subr.bf16.mxu0 %v364
    %504 = vmatpush1.bf16.msra.mxu0 %v363
    %505 = vmatprep.subr.bf16.mxu0 %v358
    %506 = vmatpush1.bf16.msra.mxu0 %v357
    %507 = vmatprep.subr.bf16.mxu0 %v352
    %508 = vmatpush1.bf16.msra.mxu0 %v351
    %509 = vmatprep.subr.bf16.mxu0 %v346
    %510 = vmatpush1.bf16.msra.mxu0 %v345
    %511 = vmatprep.subr.bf16.mxu0 %v340
    %512 = vmatpush1.bf16.msra.mxu0 %v339
    %513 = vmatprep.subr.bf16.mxu0 %v334
    %514 = vmatpush1.bf16.msra.mxu0 %v333
    %515 = vmatprep.subr.bf16.mxu0 %v328
    %516 = vmatpush1.bf16.msra.mxu0 %v327
    %517 = vmatprep.subr.bf16.mxu0 0
    %518 = vmatpush2.bf16.msra.mxu0 0
    %519 = vmatprep.subr.bf16.mxu0 0
    %520 = vmatpush2.bf16.msra.mxu0 0
    %521 = vmatprep.subr.bf16.mxu0 0
    %522 = vmatpush2.bf16.msra.mxu0 0
    %523 = vmatprep.subr.bf16.mxu0 0
    %524 = vmatpush2.bf16.msra.mxu0 0
    %525 = vmatprep.subr.bf16.mxu0 0
    %526 = vmatpush2.bf16.msra.mxu0 0
    %527 = vmatprep.subr.bf16.mxu0 0
    %528 = vmatpush2.bf16.msra.mxu0 0
    %529 = vmatprep.subr.bf16.mxu0 0
    %530 = vmatpush2.bf16.msra.mxu0 0
    %531 = vmatprep.subr.bf16.mxu0 0
    %532 = vmatpush2.bf16.msra.mxu0 0
    %533 = vmatprep.mubr.bf16.mxu0 0
    %534 = vmatmul.mubr.bf16.gmra.mxu0 %v130
    %v535 = vpop.f32.mrf.mxu0
    %v536 = vadd.f32 0.0, %v535
    %v537 = vpop.f32.mrf.mxu0
    %v538 = vadd.f32 0.0, %v537
    %v539 = vpop.f32.mrf.mxu0
    %v540 = vpop.f32.mrf.mxu0
    %541 = vdwg.mxu0
    %v542 = vld [vmem:[%s3] sm:$0xf]
    %v544 = vlaneseq
    %v545 = vshrl.u32 %v544, 7
    %v546 = vsub.s32 0, %v545
    %v547 = vrot.slane %v542, %v546
    %v548 = vlaneseq
    %v549 = vshrl.u32 %v548, 7
    %v550 = vsub.s32 1, %v549
    %v551 = vrot.slane %v542, %v550
    %v552 = vlaneseq
    %v553 = vshrl.u32 %v552, 7
    %v554 = vsub.s32 2, %v553
    %v555 = vrot.slane %v542, %v554
    %v556 = vlaneseq
    %v557 = vshrl.u32 %v556, 7
    %v558 = vsub.s32 3, %v557
    %v559 = vrot.slane %v542, %v558
    %v564 = vadd.f32 %v495, %v547
    %v565 = vadd.f32 %v497, %v551
    %v566 = vadd.f32 %v536, %v555
    %v567 = vadd.f32 %v538, %v559
    %568 = vst [vmem:[#allocation3] sm:$0xff] %v564
    %569 = vst [vmem:[#allocation3 + $0x8] sm:$0xff] %v565
    %570 = vst [vmem:[#allocation3 + $0x10] sm:$0xff] %v566
    %571 = vst [vmem:[#allocation3 + $0x18] sm:$0xff] %v567
    %v572 = vld [vmem:[#allocation9] sm:$0xff]
    %v573 = vld [vmem:[#allocation9 + $0x8] sm:$0xff]
    %v574 = vld [vmem:[#allocation9 + $0x10] sm:$0xff]
    %v575 = vld [vmem:[#allocation9 + $0x18] sm:$0xff]
    %v576 = vld [vmem:[#allocation9 + $0x20] sm:$0xff]
    %v577 = vld [vmem:[#allocation9 + $0x28] sm:$0xff]
    %v578 = vld [vmem:[#allocation9 + $0x30] sm:$0xff]
    %v579 = vld [vmem:[#allocation9 + $0x38] sm:$0xff]
    %v580 = vld [vmem:[#allocation9 + $0x40] sm:$0xff]
    %v581 = vld [vmem:[#allocation9 + $0x48] sm:$0xff]
    %v582 = vld [vmem:[#allocation9 + $0x50] sm:$0xff]
    %v583 = vld [vmem:[#allocation9 + $0x58] sm:$0xff]
    %v584 = vld [vmem:[#allocation9 + $0x60] sm:$0xff]
    %v585 = vld [vmem:[#allocation9 + $0x68] sm:$0xff]
    %v586 = vld [vmem:[#allocation9 + $0x70] sm:$0xff]
    %v587 = vld [vmem:[#allocation9 + $0x78] sm:$0xff]
    %v588 = vld [vmem:[#allocation9 + $0x80] sm:$0xff]
    %v589 = vld [vmem:[#allocation9 + $0x88] sm:$0xff]
    %v590 = vld [vmem:[#allocation9 + $0x90] sm:$0xff]
    %v591 = vld [vmem:[#allocation9 + $0x98] sm:$0xff]
    %v592 = vld [vmem:[#allocation9 + $0xa0] sm:$0xff]
    %v593 = vld [vmem:[#allocation9 + $0xa8] sm:$0xff]
    %v594 = vld [vmem:[#allocation9 + $0xb0] sm:$0xff]
    %v595 = vld [vmem:[#allocation9 + $0xb8] sm:$0xff]
    %v596 = vld [vmem:[#allocation9 + $0xc0] sm:$0xff]
    %v597 = vld [vmem:[#allocation9 + $0xc8] sm:$0xff]
    %v598 = vld [vmem:[#allocation9 + $0xd0] sm:$0xff]
    %v599 = vld [vmem:[#allocation9 + $0xd8] sm:$0xff]
    %v600 = vld [vmem:[#allocation9 + $0xe0] sm:$0xff]
    %v601 = vld [vmem:[#allocation9 + $0xe8] sm:$0xff]
    %v602 = vld [vmem:[#allocation9 + $0xf0] sm:$0xff]
    %v603 = vld [vmem:[#allocation9 + $0xf8] sm:$0xff]
    %v604 = vld [vmem:[#allocation3] ss:$8 sm:$0xf]
    %v637 = vunpack.c.l.b16 %v572
    %v638 = vunpack.c.h.b16 %v572
    %v639 = vunpack.c.l.b16 %v573
    %v640 = vunpack.c.h.b16 %v573
    %v641 = vunpack.c.l.b16 %v574
    %v642 = vunpack.c.h.b16 %v574
    %v643 = vunpack.c.l.b16 %v575
    %v644 = vunpack.c.h.b16 %v575
    %v645 = vunpack.c.l.b16 %v576
    %v646 = vunpack.c.h.b16 %v576
    %v647 = vunpack.c.l.b16 %v577
    %v648 = vunpack.c.h.b16 %v577
    %v649 = vunpack.c.l.b16 %v578
    %v650 = vunpack.c.h.b16 %v578
    %v651 = vunpack.c.l.b16 %v579
    %v652 = vunpack.c.h.b16 %v579
    %v653 = vunpack.c.l.b16 %v580
    %v654 = vunpack.c.h.b16 %v580
    %v655 = vunpack.c.l.b16 %v581
    %v656 = vunpack.c.h.b16 %v581
    %v657 = vunpack.c.l.b16 %v582
    %v658 = vunpack.c.h.b16 %v582
    %v659 = vunpack.c.l.b16 %v583
    %v660 = vunpack.c.h.b16 %v583
    %v661 = vunpack.c.l.b16 %v584
    %v662 = vunpack.c.h.b16 %v584
    %v663 = vunpack.c.l.b16 %v585
    %v664 = vunpack.c.h.b16 %v585
    %v665 = vunpack.c.l.b16 %v586
    %v666 = vunpack.c.h.b16 %v586
    %v667 = vunpack.c.l.b16 %v587
    %v668 = vunpack.c.h.b16 %v587
    %v669 = vunpack.c.l.b16 %v588
    %v670 = vunpack.c.h.b16 %v588
    %v671 = vunpack.c.l.b16 %v589
    %v672 = vunpack.c.h.b16 %v589
    %v673 = vunpack.c.l.b16 %v590
    %v674 = vunpack.c.h.b16 %v590
    %v675 = vunpack.c.l.b16 %v591
    %v676 = vunpack.c.h.b16 %v591
    %v677 = vunpack.c.l.b16 %v592
    %v678 = vunpack.c.h.b16 %v592
    %v679 = vunpack.c.l.b16 %v593
    %v680 = vunpack.c.h.b16 %v593
    %v681 = vunpack.c.l.b16 %v594
    %v682 = vunpack.c.h.b16 %v594
    %v683 = vunpack.c.l.b16 %v595
    %v684 = vunpack.c.h.b16 %v595
    %v685 = vunpack.c.l.b16 %v596
    %v686 = vunpack.c.h.b16 %v596
    %v687 = vunpack.c.l.b16 %v597
    %v688 = vunpack.c.h.b16 %v597
    %v689 = vunpack.c.l.b16 %v598
    %v690 = vunpack.c.h.b16 %v598
    %v691 = vunpack.c.l.b16 %v599
    %v692 = vunpack.c.h.b16 %v599
    %v693 = vunpack.c.l.b16 %v600
    %v694 = vunpack.c.h.b16 %v600
    %v695 = vunpack.c.l.b16 %v601
    %v696 = vunpack.c.h.b16 %v601
    %v697 = vunpack.c.l.b16 %v602
    %v698 = vunpack.c.h.b16 %v602
    %v699 = vunpack.c.l.b16 %v603
    %v700 = vunpack.c.h.b16 %v603
    %v701 = vpack.c.b16 %v641, %v637
    %v702 = vpack.c.b16 %v642, %v638
    %v703 = vpack.c.b16 %v643, %v639
    %v704 = vpack.c.b16 %v644, %v640
    %v705 = vpack.c.b16 %v649, %v645
    %v706 = vpack.c.b16 %v650, %v646
    %v707 = vpack.c.b16 %v651, %v647
    %v708 = vpack.c.b16 %v652, %v648
    %v709 = vpack.c.b16 %v657, %v653
    %v710 = vpack.c.b16 %v658, %v654
    %v711 = vpack.c.b16 %v659, %v655
    %v712 = vpack.c.b16 %v660, %v656
    %v713 = vpack.c.b16 %v665, %v661
    %v714 = vpack.c.b16 %v666, %v662
    %v715 = vpack.c.b16 %v667, %v663
    %v716 = vpack.c.b16 %v668, %v664
    %v717 = vpack.c.b16 %v673, %v669
    %v718 = vpack.c.b16 %v674, %v670
    %v719 = vpack.c.b16 %v675, %v671
    %v720 = vpack.c.b16 %v676, %v672
    %v721 = vpack.c.b16 %v681, %v677
    %v722 = vpack.c.b16 %v682, %v678
    %v723 = vpack.c.b16 %v683, %v679
    %v724 = vpack.c.b16 %v684, %v680
    %v725 = vpack.c.b16 %v689, %v685
    %v726 = vpack.c.b16 %v690, %v686
    %v727 = vpack.c.b16 %v691, %v687
    %v728 = vpack.c.b16 %v692, %v688
    %v729 = vpack.c.b16 %v697, %v693
    %v730 = vpack.c.b16 %v698, %v694
    %v731 = vpack.c.b16 %v699, %v695
    %v732 = vpack.c.b16 %v700, %v696
    %765 = vmatprep.subr.bf16.mxu0 %v730
    %766 = vmatpush1.bf16.msra.mxu0 %v729
    %767 = vmatprep.subr.bf16.mxu0 %v726
    %768 = vmatpush1.bf16.msra.mxu0 %v725
    %769 = vmatprep.subr.bf16.mxu0 %v722
    %770 = vmatpush1.bf16.msra.mxu0 %v721
    %771 = vmatprep.subr.bf16.mxu0 %v718
    %772 = vmatpush1.bf16.msra.mxu0 %v717
    %773 = vmatprep.subr.bf16.mxu0 %v714
    %774 = vmatpush1.bf16.msra.mxu0 %v713
    %775 = vmatprep.subr.bf16.mxu0 %v710
    %776 = vmatpush1.bf16.msra.mxu0 %v709
    %777 = vmatprep.subr.bf16.mxu0 %v706
    %778 = vmatpush1.bf16.msra.mxu0 %v705
    %779 = vmatprep.subr.bf16.mxu0 %v702
    %780 = vmatpush1.bf16.msra.mxu0 %v701
    %781 = vmatprep.subr.bf16.mxu0 0
    %782 = vmatpush2.bf16.msra.mxu0 0
    %783 = vmatprep.subr.bf16.mxu0 0
    %784 = vmatpush2.bf16.msra.mxu0 0
    %785 = vmatprep.subr.bf16.mxu0 0
    %786 = vmatpush2.bf16.msra.mxu0 0
    %787 = vmatprep.subr.bf16.mxu0 0
    %788 = vmatpush2.bf16.msra.mxu0 0
    %789 = vmatprep.subr.bf16.mxu0 0
    %790 = vmatpush2.bf16.msra.mxu0 0
    %791 = vmatprep.subr.bf16.mxu0 0
    %792 = vmatpush2.bf16.msra.mxu0 0
    %793 = vmatprep.subr.bf16.mxu0 0
    %794 = vmatpush2.bf16.msra.mxu0 0
    %795 = vmatprep.subr.bf16.mxu0 0
    %796 = vmatpush2.bf16.msra.mxu0 0
    %797 = vmatprep.mubr.bf16.mxu0 0
    %798 = vmatmul.mubr.bf16.gmra.mxu0 0
    %v799 = vpop.f32.mrf.mxu0
    %v800 = vadd.f32 0.0, %v799
    %v801 = vpop.f32.mrf.mxu0
    %v802 = vadd.f32 0.0, %v801
    %v803 = vpop.f32.mrf.mxu0
    %v804 = vpop.f32.mrf.mxu0
    %805 = vdwg.mxu0
    %806 = vmatprep.subr.bf16.mxu0 %v732
    %807 = vmatpush1.bf16.msra.mxu0 %v731
    %808 = vmatprep.subr.bf16.mxu0 %v728
    %809 = vmatpush1.bf16.msra.mxu0 %v727
    %810 = vmatprep.subr.bf16.mxu0 %v724
    %811 = vmatpush1.bf16.msra.mxu0 %v723
    %812 = vmatprep.subr.bf16.mxu0 %v720
    %813 = vmatpush1.bf16.msra.mxu0 %v719
    %814 = vmatprep.subr.bf16.mxu0 %v716
    %815 = vmatpush1.bf16.msra.mxu0 %v715
    %816 = vmatprep.subr.bf16.mxu0 %v712
    %817 = vmatpush1.bf16.msra.mxu0 %v711
    %818 = vmatprep.subr.bf16.mxu0 %v708
    %819 = vmatpush1.bf16.msra.mxu0 %v707
    %820 = vmatprep.subr.bf16.mxu0 %v704
    %821 = vmatpush1.bf16.msra.mxu0 %v703
    %822 = vmatprep.subr.bf16.mxu0 0
    %823 = vmatpush2.bf16.msra.mxu0 0
    %824 = vmatprep.subr.bf16.mxu0 0
    %825 = vmatpush2.bf16.msra.mxu0 0
    %826 = vmatprep.subr.bf16.mxu0 0
    %827 = vmatpush2.bf16.msra.mxu0 0
    %828 = vmatprep.subr.bf16.mxu0 0
    %829 = vmatpush2.bf16.msra.mxu0 0
    %830 = vmatprep.subr.bf16.mxu0 0
    %831 = vmatpush2.bf16.msra.mxu0 0
    %832 = vmatprep.subr.bf16.mxu0 0
    %833 = vmatpush2.bf16.msra.mxu0 0
    %834 = vmatprep.subr.bf16.mxu0 0
    %835 = vmatpush2.bf16.msra.mxu0 0
    %836 = vmatprep.subr.bf16.mxu0 0
    %837 = vmatpush2.bf16.msra.mxu0 0
    %838 = vmatprep.mubr.bf16.mxu0 0
    %839 = vmatmul.mubr.bf16.gmra.mxu0 0
    %v840 = vpop.f32.mrf.mxu0
    %v841 = vadd.f32 0.0, %v840
    %v842 = vpop.f32.mrf.mxu0
    %v843 = vadd.f32 0.0, %v842
    %v844 = vpop.f32.mrf.mxu0
    %v845 = vpop.f32.mrf.mxu0
    %846 = vdwg.mxu0
    %v851 = vcombine.low %v800, %v802
    %v852 = vcombine.low %v841, %v843
    %v854 = vunpack.c.l.s4 1966171168
    %v855 = vunpack.c.0.s8 %v854
    %v856 = vlaneseq
    %v857 = vshrl.u32 %v856, 7
    %v858 = vsub.s32 %v855, %v857
    %v859 = vrot.slane %v851, %v858
    %v861 = vunpack.c.l.s4 1966171168
    %v862 = vunpack.c.0.s8 %v861
    %v863 = vlaneseq
    %v864 = vshrl.u32 %v863, 7
    %v865 = vsub.s32 %v862, %v864
    %v866 = vrot.slane %v852, %v865
    %v867 = vcombine.low %v859, %v866
    %v869 = vunpack.c.l.s4 1966171168
    %v870 = vunpack.c.0.s8 %v869
    %v871 = vlaneseq
    %v872 = vshrl.u32 %v871, 7
    %v873 = vsub.s32 %v870, %v872
    %v874 = vrot.slane %v867, %v873
    %v876 = vadd.f32 %v604, %v874
    %v877 = vxor.u32 %v876, 2147483648
    %v878 = vmul.f32 %v877, 1.442695
    %v879 = vpow.pop %v878
    %v880 = vadd.f32 %v879, 1.0
    %v881 = vrcp.pop %v880
    %v882 = vmul.f32 1.0, %v881
    %v884 = vrot.slane %v876, 2
    %v886 = vtanh.pop %v884
    %v887 = vrot.slane %v876, 3
    %v889 = vxor.u32 %v887, 2147483648
    %v890 = vmul.f32 %v889, 1.442695
    %v891 = vpow.pop %v890
    %v892 = vadd.f32 %v891, 1.0
    %v893 = vrcp.pop %v892
    %v894 = vmul.f32 1.0, %v893
    %v896 = vrot.slane %v882, 1
    %v898 = vmul.f32 %v896, 0.0
    %v899 = vmul.f32 %v882, %v886
    %v900 = vadd.f32 %v898, %v899
    %v901 = vtanh.pop %v900
    %v902 = vmul.f32 %v894, %v901
    %903 = vst [vmem:[#allocation2] sm:$0x1] %v902
    %s904 = scalar_lea.vmem [#allocation3], 1
    %v905 = vld [vmem:[%s904] ss:$8 sm:$0xf]
    %v906 = vpack.c.bf16 %v902, %v902
    %907 = vmatprep.subr.bf16.mxu0 %v730
    %908 = vmatpush1.bf16.msra.mxu0 %v729
    %909 = vmatprep.subr.bf16.mxu0 %v726
    %910 = vmatpush1.bf16.msra.mxu0 %v725
    %911 = vmatprep.subr.bf16.mxu0 %v722
    %912 = vmatpush1.bf16.msra.mxu0 %v721
    %913 = vmatprep.subr.bf16.mxu0 %v718
    %914 = vmatpush1.bf16.msra.mxu0 %v717
    %915 = vmatprep.subr.bf16.mxu0 %v714
    %916 = vmatpush1.bf16.msra.mxu0 %v713
    %917 = vmatprep.subr.bf16.mxu0 %v710
    %918 = vmatpush1.bf16.msra.mxu0 %v709
    %919 = vmatprep.subr.bf16.mxu0 %v706
    %920 = vmatpush1.bf16.msra.mxu0 %v705
    %921 = vmatprep.subr.bf16.mxu0 %v702
    %922 = vmatpush1.bf16.msra.mxu0 %v701
    %923 = vmatprep.subr.bf16.mxu0 0
    %924 = vmatpush2.bf16.msra.mxu0 0
    %925 = vmatprep.subr.bf16.mxu0 0
    %926 = vmatpush2.bf16.msra.mxu0 0
    %927 = vmatprep.subr.bf16.mxu0 0
    %928 = vmatpush2.bf16.msra.mxu0 0
    %929 = vmatprep.subr.bf16.mxu0 0
    %930 = vmatpush2.bf16.msra.mxu0 0
    %931 = vmatprep.subr.bf16.mxu0 0
    %932 = vmatpush2.bf16.msra.mxu0 0
    %933 = vmatprep.subr.bf16.mxu0 0
    %934 = vmatpush2.bf16.msra.mxu0 0
    %935 = vmatprep.subr.bf16.mxu0 0
    %936 = vmatpush2.bf16.msra.mxu0 0
    %937 = vmatprep.subr.bf16.mxu0 0
    %938 = vmatpush2.bf16.msra.mxu0 0
    %939 = vmatprep.mubr.bf16.mxu0 0
    %940 = vmatmul.mubr.bf16.gmra.mxu0 %v906
    %v941 = vpop.f32.mrf.mxu0
    %v942 = vadd.f32 0.0, %v941
    %v943 = vpop.f32.mrf.mxu0
    %v944 = vadd.f32 0.0, %v943
    %v945 = vpop.f32.mrf.mxu0
    %v946 = vpop.f32.mrf.mxu0
    %947 = vdwg.mxu0
    %948 = vmatprep.subr.bf16.mxu0 %v732
    %949 = vmatpush1.bf16.msra.mxu0 %v731
    %950 = vmatprep.subr.bf16.mxu0 %v728
    %951 = vmatpush1.bf16.msra.mxu0 %v727
    %952 = vmatprep.subr.bf16.mxu0 %v724
    %953 = vmatpush1.bf16.msra.mxu0 %v723
    %954 = vmatprep.subr.bf16.mxu0 %v720
    %955 = vmatpush1.bf16.msra.mxu0 %v719
    %956 = vmatprep.subr.bf16.mxu0 %v716
    %957 = vmatpush1.bf16.msra.mxu0 %v715
    %958 = vmatprep.subr.bf16.mxu0 %v712
    %959 = vmatpush1.bf16.msra.mxu0 %v711
    %960 = vmatprep.subr.bf16.mxu0 %v708
    %961 = vmatpush1.bf16.msra.mxu0 %v707
    %962 = vmatprep.subr.bf16.mxu0 %v704
    %963 = vmatpush1.bf16.msra.mxu0 %v703
    %964 = vmatprep.subr.bf16.mxu0 0
    %965 = vmatpush2.bf16.msra.mxu0 0
    %966 = vmatprep.subr.bf16.mxu0 0
    %967 = vmatpush2.bf16.msra.mxu0 0
    %968 = vmatprep.subr.bf16.mxu0 0
    %969 = vmatpush2.bf16.msra.mxu0 0
    %970 = vmatprep.subr.bf16.mxu0 0
    %971 = vmatpush2.bf16.msra.mxu0 0
    %972 = vmatprep.subr.bf16.mxu0 0
    %973 = vmatpush2.bf16.msra.mxu0 0
    %974 = vmatprep.subr.bf16.mxu0 0
    %975 = vmatpush2.bf16.msra.mxu0 0
    %976 = vmatprep.subr.bf16.mxu0 0
    %977 = vmatpush2.bf16.msra.mxu0 0
    %978 = vmatprep.subr.bf16.mxu0 0
    %979 = vmatpush2.bf16.msra.mxu0 0
    %980 = vmatprep.mubr.bf16.mxu0 0
    %981 = vmatmul.mubr.bf16.gmra.mxu0 %v906
    %v982 = vpop.f32.mrf.mxu0
    %v983 = vadd.f32 0.0, %v982
    %v984 = vpop.f32.mrf.mxu0
    %v985 = vadd.f32 0.0, %v984
    %v986 = vpop.f32.mrf.mxu0
    %v987 = vpop.f32.mrf.mxu0
    %988 = vdwg.mxu0
    %v993 = vcombine.low %v942, %v944
    %v994 = vcombine.low %v983, %v985
    %v996 = vunpack.c.l.s4 1966171168
    %v997 = vunpack.c.0.s8 %v996
    %v998 = vlaneseq
    %v999 = vshrl.u32 %v998, 7
    %v1000 = vsub.s32 %v997, %v999
    %v1001 = vrot.slane %v993, %v1000
    %v1003 = vunpack.c.l.s4 1966171168
    %v1004 = vunpack.c.0.s8 %v1003
    %v1005 = vlaneseq
    %v1006 = vshrl.u32 %v1005, 7
    %v1007 = vsub.s32 %v1004, %v1006
    %v1008 = vrot.slane %v994, %v1007
    %v1009 = vcombine.low %v1001, %v1008
    %v1011 = vunpack.c.l.s4 1966171168
    %v1012 = vunpack.c.0.s8 %v1011
    %v1013 = vlaneseq
    %v1014 = vshrl.u32 %v1013, 7
    %v1015 = vsub.s32 %v1012, %v1014
    %v1016 = vrot.slane %v1009, %v1015
    %v1018 = vadd.f32 %v905, %v1016
    %v1019 = vxor.u32 %v1018, 2147483648
    %v1020 = vmul.f32 %v1019, 1.442695
    %v1021 = vpow.pop %v1020
    %v1022 = vadd.f32 %v1021, 1.0
    %v1023 = vrcp.pop %v1022
    %v1024 = vmul.f32 1.0, %v1023
    %v1026 = vrot.slane %v1018, 2
    %v1028 = vtanh.pop %v1026
    %v1029 = vrot.slane %v1018, 3
    %v1031 = vxor.u32 %v1029, 2147483648
    %v1032 = vmul.f32 %v1031, 1.442695
    %v1033 = vpow.pop %v1032
    %v1034 = vadd.f32 %v1033, 1.0
    %v1035 = vrcp.pop %v1034
    %v1036 = vmul.f32 1.0, %v1035
    %v1038 = vrot.slane %v1024, 1
    %v1040 = vmul.f32 %v1038, %v900
    %v1041 = vmul.f32 %v1024, %v1028
    %v1042 = vadd.f32 %v1040, %v1041
    %v1043 = vtanh.pop %v1042
    %v1044 = vmul.f32 %v1036, %v1043
    %1045 = vst [vmem:[#allocation2 + $0x1] sm:$0x1] %v1044
    %s1046 = scalar_lea.vmem [#allocation3], 2
    %v1047 = vld [vmem:[%s1046] ss:$8 sm:$0xf]
    %v1048 = vpack.c.bf16 %v1044, %v1044
    %1049 = vmatprep.subr.bf16.mxu0 %v730
    %1050 = vmatpush1.bf16.msra.mxu0 %v729
    %1051 = vmatprep.subr.bf16.mxu0 %v726
    %1052 = vmatpush1.bf16.msra.mxu0 %v725
    %1053 = vmatprep.subr.bf16.mxu0 %v722
    %1054 = vmatpush1.bf16.msra.mxu0 %v721
    %1055 = vmatprep.subr.bf16.mxu0 %v718
    %1056 = vmatpush1.bf16.msra.mxu0 %v717
    %1057 = vmatprep.subr.bf16.mxu0 %v714
    %1058 = vmatpush1.bf16.msra.mxu0 %v713
    %1059 = vmatprep.subr.bf16.mxu0 %v710
    %1060 = vmatpush1.bf16.msra.mxu0 %v709
    %1061 = vmatprep.subr.bf16.mxu0 %v706
    %1062 = vmatpush1.bf16.msra.mxu0 %v705
    %1063 = vmatprep.subr.bf16.mxu0 %v702
    %1064 = vmatpush1.bf16.msra.mxu0 %v701
    %1065 = vmatprep.subr.bf16.mxu0 0
    %1066 = vmatpush2.bf16.msra.mxu0 0
    %1067 = vmatprep.subr.bf16.mxu0 0
    %1068 = vmatpush2.bf16.msra.mxu0 0
    %1069 = vmatprep.subr.bf16.mxu0 0
    %1070 = vmatpush2.bf16.msra.mxu0 0
    %1071 = vmatprep.subr.bf16.mxu0 0
    %1072 = vmatpush2.bf16.msra.mxu0 0
    %1073 = vmatprep.subr.bf16.mxu0 0
    %1074 = vmatpush2.bf16.msra.mxu0 0
    %1075 = vmatprep.subr.bf16.mxu0 0
    %1076 = vmatpush2.bf16.msra.mxu0 0
    %1077 = vmatprep.subr.bf16.mxu0 0
    %1078 = vmatpush2.bf16.msra.mxu0 0
    %1079 = vmatprep.subr.bf16.mxu0 0
    %1080 = vmatpush2.bf16.msra.mxu0 0
    %1081 = vmatprep.mubr.bf16.mxu0 0
    %1082 = vmatmul.mubr.bf16.gmra.mxu0 %v1048
    %v1083 = vpop.f32.mrf.mxu0
    %v1084 = vadd.f32 0.0, %v1083
    %v1085 = vpop.f32.mrf.mxu0
    %v1086 = vadd.f32 0.0, %v1085
    %v1087 = vpop.f32.mrf.mxu0
    %v1088 = vpop.f32.mrf.mxu0
    %1089 = vdwg.mxu0
    %1090 = vmatprep.subr.bf16.mxu0 %v732
    %1091 = vmatpush1.bf16.msra.mxu0 %v731
    %1092 = vmatprep.subr.bf16.mxu0 %v728
    %1093 = vmatpush1.bf16.msra.mxu0 %v727
    %1094 = vmatprep.subr.bf16.mxu0 %v724
    %1095 = vmatpush1.bf16.msra.mxu0 %v723
    %1096 = vmatprep.subr.bf16.mxu0 %v720
    %1097 = vmatpush1.bf16.msra.mxu0 %v719
    %1098 = vmatprep.subr.bf16.mxu0 %v716
    %1099 = vmatpush1.bf16.msra.mxu0 %v715
    %1100 = vmatprep.subr.bf16.mxu0 %v712
    %1101 = vmatpush1.bf16.msra.mxu0 %v711
    %1102 = vmatprep.subr.bf16.mxu0 %v708
    %1103 = vmatpush1.bf16.msra.mxu0 %v707
    %1104 = vmatprep.subr.bf16.mxu0 %v704
    %1105 = vmatpush1.bf16.msra.mxu0 %v703
    %1106 = vmatprep.subr.bf16.mxu0 0
    %1107 = vmatpush2.bf16.msra.mxu0 0
    %1108 = vmatprep.subr.bf16.mxu0 0
    %1109 = vmatpush2.bf16.msra.mxu0 0
    %1110 = vmatprep.subr.bf16.mxu0 0
    %1111 = vmatpush2.bf16.msra.mxu0 0
    %1112 = vmatprep.subr.bf16.mxu0 0
    %1113 = vmatpush2.bf16.msra.mxu0 0
    %1114 = vmatprep.subr.bf16.mxu0 0
    %1115 = vmatpush2.bf16.msra.mxu0 0
    %1116 = vmatprep.subr.bf16.mxu0 0
    %1117 = vmatpush2.bf16.msra.mxu0 0
    %1118 = vmatprep.subr.bf16.mxu0 0
    %1119 = vmatpush2.bf16.msra.mxu0 0
    %1120 = vmatprep.subr.bf16.mxu0 0
    %1121 = vmatpush2.bf16.msra.mxu0 0
    %1122 = vmatprep.mubr.bf16.mxu0 0
    %1123 = vmatmul.mubr.bf16.gmra.mxu0 %v1048
    %v1124 = vpop.f32.mrf.mxu0
    %v1125 = vadd.f32 0.0, %v1124
    %v1126 = vpop.f32.mrf.mxu0
    %v1127 = vadd.f32 0.0, %v1126
    %v1128 = vpop.f32.mrf.mxu0
    %v1129 = vpop.f32.mrf.mxu0
    %1130 = vdwg.mxu0
    %v1135 = vcombine.low %v1084, %v1086
    %v1136 = vcombine.low %v1125, %v1127
    %v1138 = vunpack.c.l.s4 1966171168
    %v1139 = vunpack.c.0.s8 %v1138
    %v1140 = vlaneseq
    %v1141 = vshrl.u32 %v1140, 7
    %v1142 = vsub.s32 %v1139, %v1141
    %v1143 = vrot.slane %v1135, %v1142
    %v1145 = vunpack.c.l.s4 1966171168
    %v1146 = vunpack.c.0.s8 %v1145
    %v1147 = vlaneseq
    %v1148 = vshrl.u32 %v1147, 7
    %v1149 = vsub.s32 %v1146, %v1148
    %v1150 = vrot.slane %v1136, %v1149
    %v1151 = vcombine.low %v1143, %v1150
    %v1153 = vunpack.c.l.s4 1966171168
    %v1154 = vunpack.c.0.s8 %v1153
    %v1155 = vlaneseq
    %v1156 = vshrl.u32 %v1155, 7
    %v1157 = vsub.s32 %v1154, %v1156
    %v1158 = vrot.slane %v1151, %v1157
    %v1160 = vadd.f32 %v1047, %v1158
    %v1161 = vxor.u32 %v1160, 2147483648
    %v1162 = vmul.f32 %v1161, 1.442695
    %v1163 = vpow.pop %v1162
    %v1164 = vadd.f32 %v1163, 1.0
    %v1165 = vrcp.pop %v1164
    %v1166 = vmul.f32 1.0, %v1165
    %v1168 = vrot.slane %v1160, 2
    %v1170 = vtanh.pop %v1168
    %v1171 = vrot.slane %v1160, 3
    %v1173 = vxor.u32 %v1171, 2147483648
    %v1174 = vmul.f32 %v1173, 1.442695
    %v1175 = vpow.pop %v1174
    %v1176 = vadd.f32 %v1175, 1.0
    %v1177 = vrcp.pop %v1176
    %v1178 = vmul.f32 1.0, %v1177
    %v1180 = vrot.slane %v1166, 1
    %v1182 = vmul.f32 %v1180, %v1042
    %v1183 = vmul.f32 %v1166, %v1170
    %v1184 = vadd.f32 %v1182, %v1183
    %v1185 = vtanh.pop %v1184
    %v1186 = vmul.f32 %v1178, %v1185
    %1187 = vst [vmem:[#allocation2 + $0x2] sm:$0x1] %v1186
    %s1188 = scalar_lea.vmem [#allocation3], 3
    %v1189 = vld [vmem:[%s1188] ss:$8 sm:$0xf]
    %v1190 = vpack.c.bf16 %v1186, %v1186
    %1191 = vmatprep.subr.bf16.mxu0 %v730
    %1192 = vmatpush1.bf16.msra.mxu0 %v729
    %1193 = vmatprep.subr.bf16.mxu0 %v726
    %1194 = vmatpush1.bf16.msra.mxu0 %v725
    %1195 = vmatprep.subr.bf16.mxu0 %v722
    %1196 = vmatpush1.bf16.msra.mxu0 %v721
    %1197 = vmatprep.subr.bf16.mxu0 %v718
    %1198 = vmatpush1.bf16.msra.mxu0 %v717
    %1199 = vmatprep.subr.bf16.mxu0 %v714
    %1200 = vmatpush1.bf16.msra.mxu0 %v713
    %1201 = vmatprep.subr.bf16.mxu0 %v710
    %1202 = vmatpush1.bf16.msra.mxu0 %v709
    %1203 = vmatprep.subr.bf16.mxu0 %v706
    %1204 = vmatpush1.bf16.msra.mxu0 %v705
    %1205 = vmatprep.subr.bf16.mxu0 %v702
    %1206 = vmatpush1.bf16.msra.mxu0 %v701
    %1207 = vmatprep.subr.bf16.mxu0 0
    %1208 = vmatpush2.bf16.msra.mxu0 0
    %1209 = vmatprep.subr.bf16.mxu0 0
    %1210 = vmatpush2.bf16.msra.mxu0 0
    %1211 = vmatprep.subr.bf16.mxu0 0
    %1212 = vmatpush2.bf16.msra.mxu0 0
    %1213 = vmatprep.subr.bf16.mxu0 0
    %1214 = vmatpush2.bf16.msra.mxu0 0
    %1215 = vmatprep.subr.bf16.mxu0 0
    %1216 = vmatpush2.bf16.msra.mxu0 0
    %1217 = vmatprep.subr.bf16.mxu0 0
    %1218 = vmatpush2.bf16.msra.mxu0 0
    %1219 = vmatprep.subr.bf16.mxu0 0
    %1220 = vmatpush2.bf16.msra.mxu0 0
    %1221 = vmatprep.subr.bf16.mxu0 0
    %1222 = vmatpush2.bf16.msra.mxu0 0
    %1223 = vmatprep.mubr.bf16.mxu0 0
    %1224 = vmatmul.mubr.bf16.gmra.mxu0 %v1190
    %v1225 = vpop.f32.mrf.mxu0
    %v1226 = vadd.f32 0.0, %v1225
    %v1227 = vpop.f32.mrf.mxu0
    %v1228 = vadd.f32 0.0, %v1227
    %v1229 = vpop.f32.mrf.mxu0
    %v1230 = vpop.f32.mrf.mxu0
    %1231 = vdwg.mxu0
    %1232 = vmatprep.subr.bf16.mxu0 %v732
    %1233 = vmatpush1.bf16.msra.mxu0 %v731
    %1234 = vmatprep.subr.bf16.mxu0 %v728
    %1235 = vmatpush1.bf16.msra.mxu0 %v727
    %1236 = vmatprep.subr.bf16.mxu0 %v724
    %1237 = vmatpush1.bf16.msra.mxu0 %v723
    %1238 = vmatprep.subr.bf16.mxu0 %v720
    %1239 = vmatpush1.bf16.msra.mxu0 %v719
    %1240 = vmatprep.subr.bf16.mxu0 %v716
    %1241 = vmatpush1.bf16.msra.mxu0 %v715
    %1242 = vmatprep.subr.bf16.mxu0 %v712
    %1243 = vmatpush1.bf16.msra.mxu0 %v711
    %1244 = vmatprep.subr.bf16.mxu0 %v708
    %1245 = vmatpush1.bf16.msra.mxu0 %v707
    %1246 = vmatprep.subr.bf16.mxu0 %v704
    %1247 = vmatpush1.bf16.msra.mxu0 %v703
    %1248 = vmatprep.subr.bf16.mxu0 0
    %1249 = vmatpush2.bf16.msra.mxu0 0
    %1250 = vmatprep.subr.bf16.mxu0 0
    %1251 = vmatpush2.bf16.msra.mxu0 0
    %1252 = vmatprep.subr.bf16.mxu0 0
    %1253 = vmatpush2.bf16.msra.mxu0 0
    %1254 = vmatprep.subr.bf16.mxu0 0
    %1255 = vmatpush2.bf16.msra.mxu0 0
    %1256 = vmatprep.subr.bf16.mxu0 0
    %1257 = vmatpush2.bf16.msra.mxu0 0
    %1258 = vmatprep.subr.bf16.mxu0 0
    %1259 = vmatpush2.bf16.msra.mxu0 0
    %1260 = vmatprep.subr.bf16.mxu0 0
    %1261 = vmatpush2.bf16.msra.mxu0 0
    %1262 = vmatprep.subr.bf16.mxu0 0
    %1263 = vmatpush2.bf16.msra.mxu0 0
    %1264 = vmatprep.mubr.bf16.mxu0 0
    %1265 = vmatmul.mubr.bf16.gmra.mxu0 %v1190
    %v1266 = vpop.f32.mrf.mxu0
    %v1267 = vadd.f32 0.0, %v1266
    %v1268 = vpop.f32.mrf.mxu0
    %v1269 = vadd.f32 0.0, %v1268
    %v1270 = vpop.f32.mrf.mxu0
    %v1271 = vpop.f32.mrf.mxu0
    %1272 = vdwg.mxu0
    %v1277 = vcombine.low %v1226, %v1228
    %v1278 = vcombine.low %v1267, %v1269
    %v1280 = vunpack.c.l.s4 1966171168
    %v1281 = vunpack.c.0.s8 %v1280
    %v1282 = vlaneseq
    %v1283 = vshrl.u32 %v1282, 7
    %v1284 = vsub.s32 %v1281, %v1283
    %v1285 = vrot.slane %v1277, %v1284
    %v1287 = vunpack.c.l.s4 1966171168
    %v1288 = vunpack.c.0.s8 %v1287
    %v1289 = vlaneseq
    %v1290 = vshrl.u32 %v1289, 7
    %v1291 = vsub.s32 %v1288, %v1290
    %v1292 = vrot.slane %v1278, %v1291
    %v1293 = vcombine.low %v1285, %v1292
    %v1295 = vunpack.c.l.s4 1966171168
    %v1296 = vunpack.c.0.s8 %v1295
    %v1297 = vlaneseq
    %v1298 = vshrl.u32 %v1297, 7
    %v1299 = vsub.s32 %v1296, %v1298
    %v1300 = vrot.slane %v1293, %v1299
    %v1302 = vadd.f32 %v1189, %v1300
    %v1303 = vxor.u32 %v1302, 2147483648
    %v1304 = vmul.f32 %v1303, 1.442695
    %v1305 = vpow.pop %v1304
    %v1306 = vadd.f32 %v1305, 1.0
    %v1307 = vrcp.pop %v1306
    %v1308 = vmul.f32 1.0, %v1307
    %v1310 = vrot.slane %v1302, 2
    %v1312 = vtanh.pop %v1310
    %v1313 = vrot.slane %v1302, 3
    %v1315 = vxor.u32 %v1313, 2147483648
    %v1316 = vmul.f32 %v1315, 1.442695
    %v1317 = vpow.pop %v1316
    %v1318 = vadd.f32 %v1317, 1.0
    %v1319 = vrcp.pop %v1318
    %v1320 = vmul.f32 1.0, %v1319
    %v1322 = vrot.slane %v1308, 1
    %v1324 = vmul.f32 %v1322, %v1184
    %v1325 = vmul.f32 %v1308, %v1312
    %v1326 = vadd.f32 %v1324, %v1325
    %v1327 = vtanh.pop %v1326
    %v1328 = vmul.f32 %v1320, %v1327
    %1329 = vst [vmem:[#allocation2 + $0x3] sm:$0x1] %v1328
    %s1330 = scalar_lea.vmem [#allocation3], 4
    %v1331 = vld [vmem:[%s1330] ss:$8 sm:$0xf]
    %v1332 = vpack.c.bf16 %v1328, %v1328
    %1333 = vmatprep.subr.bf16.mxu0 %v730
    %1334 = vmatpush1.bf16.msra.mxu0 %v729
    %1335 = vmatprep.subr.bf16.mxu0 %v726
    %1336 = vmatpush1.bf16.msra.mxu0 %v725
    %1337 = vmatprep.subr.bf16.mxu0 %v722
    %1338 = vmatpush1.bf16.msra.mxu0 %v721
    %1339 = vmatprep.subr.bf16.mxu0 %v718
    %1340 = vmatpush1.bf16.msra.mxu0 %v717
    %1341 = vmatprep.subr.bf16.mxu0 %v714
    %1342 = vmatpush1.bf16.msra.mxu0 %v713
    %1343 = vmatprep.subr.bf16.mxu0 %v710
    %1344 = vmatpush1.bf16.msra.mxu0 %v709
    %1345 = vmatprep.subr.bf16.mxu0 %v706
    %1346 = vmatpush1.bf16.msra.mxu0 %v705
    %1347 = vmatprep.subr.bf16.mxu0 %v702
    %1348 = vmatpush1.bf16.msra.mxu0 %v701
    %1349 = vmatprep.subr.bf16.mxu0 0
    %1350 = vmatpush2.bf16.msra.mxu0 0
    %1351 = vmatprep.subr.bf16.mxu0 0
    %1352 = vmatpush2.bf16.msra.mxu0 0
    %1353 = vmatprep.subr.bf16.mxu0 0
    %1354 = vmatpush2.bf16.msra.mxu0 0
    %1355 = vmatprep.subr.bf16.mxu0 0
    %1356 = vmatpush2.bf16.msra.mxu0 0
    %1357 = vmatprep.subr.bf16.mxu0 0
    %1358 = vmatpush2.bf16.msra.mxu0 0
    %1359 = vmatprep.subr.bf16.mxu0 0
    %1360 = vmatpush2.bf16.msra.mxu0 0
    %1361 = vmatprep.subr.bf16.mxu0 0
    %1362 = vmatpush2.bf16.msra.mxu0 0
    %1363 = vmatprep.subr.bf16.mxu0 0
    %1364 = vmatpush2.bf16.msra.mxu0 0
    %1365 = vmatprep.mubr.bf16.mxu0 0
    %1366 = vmatmul.mubr.bf16.gmra.mxu0 %v1332
    %v1367 = vpop.f32.mrf.mxu0
    %v1368 = vadd.f32 0.0, %v1367
    %v1369 = vpop.f32.mrf.mxu0
    %v1370 = vadd.f32 0.0, %v1369
    %v1371 = vpop.f32.mrf.mxu0
    %v1372 = vpop.f32.mrf.mxu0
    %1373 = vdwg.mxu0
    %1374 = vmatprep.subr.bf16.mxu0 %v732
    %1375 = vmatpush1.bf16.msra.mxu0 %v731
    %1376 = vmatprep.subr.bf16.mxu0 %v728
    %1377 = vmatpush1.bf16.msra.mxu0 %v727
    %1378 = vmatprep.subr.bf16.mxu0 %v724
    %1379 = vmatpush1.bf16.msra.mxu0 %v723
    %1380 = vmatprep.subr.bf16.mxu0 %v720
    %1381 = vmatpush1.bf16.msra.mxu0 %v719
    %1382 = vmatprep.subr.bf16.mxu0 %v716
    %1383 = vmatpush1.bf16.msra.mxu0 %v715
    %1384 = vmatprep.subr.bf16.mxu0 %v712
    %1385 = vmatpush1.bf16.msra.mxu0 %v711
    %1386 = vmatprep.subr.bf16.mxu0 %v708
    %1387 = vmatpush1.bf16.msra.mxu0 %v707
    %1388 = vmatprep.subr.bf16.mxu0 %v704
    %1389 = vmatpush1.bf16.msra.mxu0 %v703
    %1390 = vmatprep.subr.bf16.mxu0 0
    %1391 = vmatpush2.bf16.msra.mxu0 0
    %1392 = vmatprep.subr.bf16.mxu0 0
    %1393 = vmatpush2.bf16.msra.mxu0 0
    %1394 = vmatprep.subr.bf16.mxu0 0
    %1395 = vmatpush2.bf16.msra.mxu0 0
    %1396 = vmatprep.subr.bf16.mxu0 0
    %1397 = vmatpush2.bf16.msra.mxu0 0
    %1398 = vmatprep.subr.bf16.mxu0 0
    %1399 = vmatpush2.bf16.msra.mxu0 0
    %1400 = vmatprep.subr.bf16.mxu0 0
    %1401 = vmatpush2.bf16.msra.mxu0 0
    %1402 = vmatprep.subr.bf16.mxu0 0
    %1403 = vmatpush2.bf16.msra.mxu0 0
    %1404 = vmatprep.subr.bf16.mxu0 0
    %1405 = vmatpush2.bf16.msra.mxu0 0
    %1406 = vmatprep.mubr.bf16.mxu0 0
    %1407 = vmatmul.mubr.bf16.gmra.mxu0 %v1332
    %v1408 = vpop.f32.mrf.mxu0
    %v1409 = vadd.f32 0.0, %v1408
    %v1410 = vpop.f32.mrf.mxu0
    %v1411 = vadd.f32 0.0, %v1410
    %v1412 = vpop.f32.mrf.mxu0
    %v1413 = vpop.f32.mrf.mxu0
    %1414 = vdwg.mxu0
    %v1419 = vcombine.low %v1368, %v1370
    %v1420 = vcombine.low %v1409, %v1411
    %v1422 = vunpack.c.l.s4 1966171168
    %v1423 = vunpack.c.0.s8 %v1422
    %v1424 = vlaneseq
    %v1425 = vshrl.u32 %v1424, 7
    %v1426 = vsub.s32 %v1423, %v1425
    %v1427 = vrot.slane %v1419, %v1426
    %v1429 = vunpack.c.l.s4 1966171168
    %v1430 = vunpack.c.0.s8 %v1429
    %v1431 = vlaneseq
    %v1432 = vshrl.u32 %v1431, 7
    %v1433 = vsub.s32 %v1430, %v1432
    %v1434 = vrot.slane %v1420, %v1433
    %v1435 = vcombine.low %v1427, %v1434
    %v1437 = vunpack.c.l.s4 1966171168
    %v1438 = vunpack.c.0.s8 %v1437
    %v1439 = vlaneseq
    %v1440 = vshrl.u32 %v1439, 7
    %v1441 = vsub.s32 %v1438, %v1440
    %v1442 = vrot.slane %v1435, %v1441
    %v1444 = vadd.f32 %v1331, %v1442
    %v1445 = vxor.u32 %v1444, 2147483648
    %v1446 = vmul.f32 %v1445, 1.442695
    %v1447 = vpow.pop %v1446
    %v1448 = vadd.f32 %v1447, 1.0
    %v1449 = vrcp.pop %v1448
    %v1450 = vmul.f32 1.0, %v1449
    %v1452 = vrot.slane %v1444, 2
    %v1454 = vtanh.pop %v1452
    %v1455 = vrot.slane %v1444, 3
    %v1457 = vxor.u32 %v1455, 2147483648
    %v1458 = vmul.f32 %v1457, 1.442695
    %v1459 = vpow.pop %v1458
    %v1460 = vadd.f32 %v1459, 1.0
    %v1461 = vrcp.pop %v1460
    %v1462 = vmul.f32 1.0, %v1461
    %v1464 = vrot.slane %v1450, 1
    %v1466 = vmul.f32 %v1464, %v1326
    %v1467 = vmul.f32 %v1450, %v1454
    %v1468 = vadd.f32 %v1466, %v1467
    %v1469 = vtanh.pop %v1468
    %v1470 = vmul.f32 %v1462, %v1469
    %1471 = vst [vmem:[#allocation2 + $0x4] sm:$0x1] %v1470
    %s1472 = scalar_lea.vmem [#allocation3], 5
    %v1473 = vld [vmem:[%s1472] ss:$8 sm:$0xf]
    %v1474 = vpack.c.bf16 %v1470, %v1470
    %1475 = vmatprep.subr.bf16.mxu0 %v730
    %1476 = vmatpush1.bf16.msra.mxu0 %v729
    %1477 = vmatprep.subr.bf16.mxu0 %v726
    %1478 = vmatpush1.bf16.msra.mxu0 %v725
    %1479 = vmatprep.subr.bf16.mxu0 %v722
    %1480 = vmatpush1.bf16.msra.mxu0 %v721
    %1481 = vmatprep.subr.bf16.mxu0 %v718
    %1482 = vmatpush1.bf16.msra.mxu0 %v717
    %1483 = vmatprep.subr.bf16.mxu0 %v714
    %1484 = vmatpush1.bf16.msra.mxu0 %v713
    %1485 = vmatprep.subr.bf16.mxu0 %v710
    %1486 = vmatpush1.bf16.msra.mxu0 %v709
    %1487 = vmatprep.subr.bf16.mxu0 %v706
    %1488 = vmatpush1.bf16.msra.mxu0 %v705
    %1489 = vmatprep.subr.bf16.mxu0 %v702
    %1490 = vmatpush1.bf16.msra.mxu0 %v701
    %1491 = vmatprep.subr.bf16.mxu0 0
    %1492 = vmatpush2.bf16.msra.mxu0 0
    %1493 = vmatprep.subr.bf16.mxu0 0
    %1494 = vmatpush2.bf16.msra.mxu0 0
    %1495 = vmatprep.subr.bf16.mxu0 0
    %1496 = vmatpush2.bf16.msra.mxu0 0
    %1497 = vmatprep.subr.bf16.mxu0 0
    %1498 = vmatpush2.bf16.msra.mxu0 0
    %1499 = vmatprep.subr.bf16.mxu0 0
    %1500 = vmatpush2.bf16.msra.mxu0 0
    %1501 = vmatprep.subr.bf16.mxu0 0
    %1502 = vmatpush2.bf16.msra.mxu0 0
    %1503 = vmatprep.subr.bf16.mxu0 0
    %1504 = vmatpush2.bf16.msra.mxu0 0
    %1505 = vmatprep.subr.bf16.mxu0 0
    %1506 = vmatpush2.bf16.msra.mxu0 0
    %1507 = vmatprep.mubr.bf16.mxu0 0
    %1508 = vmatmul.mubr.bf16.gmra.mxu0 %v1474
    %v1509 = vpop.f32.mrf.mxu0
    %v1510 = vadd.f32 0.0, %v1509
    %v1511 = vpop.f32.mrf.mxu0
    %v1512 = vadd.f32 0.0, %v1511
    %v1513 = vpop.f32.mrf.mxu0
    %v1514 = vpop.f32.mrf.mxu0
    %1515 = vdwg.mxu0
    %1516 = vmatprep.subr.bf16.mxu0 %v732
    %1517 = vmatpush1.bf16.msra.mxu0 %v731
    %1518 = vmatprep.subr.bf16.mxu0 %v728
    %1519 = vmatpush1.bf16.msra.mxu0 %v727
    %1520 = vmatprep.subr.bf16.mxu0 %v724
    %1521 = vmatpush1.bf16.msra.mxu0 %v723
    %1522 = vmatprep.subr.bf16.mxu0 %v720
    %1523 = vmatpush1.bf16.msra.mxu0 %v719
    %1524 = vmatprep.subr.bf16.mxu0 %v716
    %1525 = vmatpush1.bf16.msra.mxu0 %v715
    %1526 = vmatprep.subr.bf16.mxu0 %v712
    %1527 = vmatpush1.bf16.msra.mxu0 %v711
    %1528 = vmatprep.subr.bf16.mxu0 %v708
    %1529 = vmatpush1.bf16.msra.mxu0 %v707
    %1530 = vmatprep.subr.bf16.mxu0 %v704
    %1531 = vmatpush1.bf16.msra.mxu0 %v703
    %1532 = vmatprep.subr.bf16.mxu0 0
    %1533 = vmatpush2.bf16.msra.mxu0 0
    %1534 = vmatprep.subr.bf16.mxu0 0
    %1535 = vmatpush2.bf16.msra.mxu0 0
    %1536 = vmatprep.subr.bf16.mxu0 0
    %1537 = vmatpush2.bf16.msra.mxu0 0
    %1538 = vmatprep.subr.bf16.mxu0 0
    %1539 = vmatpush2.bf16.msra.mxu0 0
    %1540 = vmatprep.subr.bf16.mxu0 0
    %1541 = vmatpush2.bf16.msra.mxu0 0
    %1542 = vmatprep.subr.bf16.mxu0 0
    %1543 = vmatpush2.bf16.msra.mxu0 0
    %1544 = vmatprep.subr.bf16.mxu0 0
    %1545 = vmatpush2.bf16.msra.mxu0 0
    %1546 = vmatprep.subr.bf16.mxu0 0
    %1547 = vmatpush2.bf16.msra.mxu0 0
    %1548 = vmatprep.mubr.bf16.mxu0 0
    %1549 = vmatmul.mubr.bf16.gmra.mxu0 %v1474
    %v1550 = vpop.f32.mrf.mxu0
    %v1551 = vadd.f32 0.0, %v1550
    %v1552 = vpop.f32.mrf.mxu0
    %v1553 = vadd.f32 0.0, %v1552
    %v1554 = vpop.f32.mrf.mxu0
    %v1555 = vpop.f32.mrf.mxu0
    %1556 = vdwg.mxu0
    %v1561 = vcombine.low %v1510, %v1512
    %v1562 = vcombine.low %v1551, %v1553
    %v1564 = vunpack.c.l.s4 1966171168
    %v1565 = vunpack.c.0.s8 %v1564
    %v1566 = vlaneseq
    %v1567 = vshrl.u32 %v1566, 7
    %v1568 = vsub.s32 %v1565, %v1567
    %v1569 = vrot.slane %v1561, %v1568
    %v1571 = vunpack.c.l.s4 1966171168
    %v1572 = vunpack.c.0.s8 %v1571
    %v1573 = vlaneseq
    %v1574 = vshrl.u32 %v1573, 7
    %v1575 = vsub.s32 %v1572, %v1574
    %v1576 = vrot.slane %v1562, %v1575
    %v1577 = vcombine.low %v1569, %v1576
    %v1579 = vunpack.c.l.s4 1966171168
    %v1580 = vunpack.c.0.s8 %v1579
    %v1581 = vlaneseq
    %v1582 = vshrl.u32 %v1581, 7
    %v1583 = vsub.s32 %v1580, %v1582
    %v1584 = vrot.slane %v1577, %v1583
    %v1586 = vadd.f32 %v1473, %v1584
    %v1587 = vxor.u32 %v1586, 2147483648
    %v1588 = vmul.f32 %v1587, 1.442695
    %v1589 = vpow.pop %v1588
    %v1590 = vadd.f32 %v1589, 1.0
    %v1591 = vrcp.pop %v1590
    %v1592 = vmul.f32 1.0, %v1591
    %v1594 = vrot.slane %v1586, 2
    %v1596 = vtanh.pop %v1594
    %v1597 = vrot.slane %v1586, 3
    %v1599 = vxor.u32 %v1597, 2147483648
    %v1600 = vmul.f32 %v1599, 1.442695
    %v1601 = vpow.pop %v1600
    %v1602 = vadd.f32 %v1601, 1.0
    %v1603 = vrcp.pop %v1602
    %v1604 = vmul.f32 1.0, %v1603
    %v1606 = vrot.slane %v1592, 1
    %v1608 = vmul.f32 %v1606, %v1468
    %v1609 = vmul.f32 %v1592, %v1596
    %v1610 = vadd.f32 %v1608, %v1609
    %v1611 = vtanh.pop %v1610
    %v1612 = vmul.f32 %v1604, %v1611
    %1613 = vst [vmem:[#allocation2 + $0x5] sm:$0x1] %v1612
    %s1614 = scalar_lea.vmem [#allocation3], 6
    %v1615 = vld [vmem:[%s1614] ss:$8 sm:$0xf]
    %v1616 = vpack.c.bf16 %v1612, %v1612
    %1617 = vmatprep.subr.bf16.mxu0 %v730
    %1618 = vmatpush1.bf16.msra.mxu0 %v729
    %1619 = vmatprep.subr.bf16.mxu0 %v726
    %1620 = vmatpush1.bf16.msra.mxu0 %v725
    %1621 = vmatprep.subr.bf16.mxu0 %v722
    %1622 = vmatpush1.bf16.msra.mxu0 %v721
    %1623 = vmatprep.subr.bf16.mxu0 %v718
    %1624 = vmatpush1.bf16.msra.mxu0 %v717
    %1625 = vmatprep.subr.bf16.mxu0 %v714
    %1626 = vmatpush1.bf16.msra.mxu0 %v713
    %1627 = vmatprep.subr.bf16.mxu0 %v710
    %1628 = vmatpush1.bf16.msra.mxu0 %v709
    %1629 = vmatprep.subr.bf16.mxu0 %v706
    %1630 = vmatpush1.bf16.msra.mxu0 %v705
    %1631 = vmatprep.subr.bf16.mxu0 %v702
    %1632 = vmatpush1.bf16.msra.mxu0 %v701
    %1633 = vmatprep.subr.bf16.mxu0 0
    %1634 = vmatpush2.bf16.msra.mxu0 0
    %1635 = vmatprep.subr.bf16.mxu0 0
    %1636 = vmatpush2.bf16.msra.mxu0 0
    %1637 = vmatprep.subr.bf16.mxu0 0
    %1638 = vmatpush2.bf16.msra.mxu0 0
    %1639 = vmatprep.subr.bf16.mxu0 0
    %1640 = vmatpush2.bf16.msra.mxu0 0
    %1641 = vmatprep.subr.bf16.mxu0 0
    %1642 = vmatpush2.bf16.msra.mxu0 0
    %1643 = vmatprep.subr.bf16.mxu0 0
    %1644 = vmatpush2.bf16.msra.mxu0 0
    %1645 = vmatprep.subr.bf16.mxu0 0
    %1646 = vmatpush2.bf16.msra.mxu0 0
    %1647 = vmatprep.subr.bf16.mxu0 0
    %1648 = vmatpush2.bf16.msra.mxu0 0
    %1649 = vmatprep.mubr.bf16.mxu0 0
    %1650 = vmatmul.mubr.bf16.gmra.mxu0 %v1616
    %v1651 = vpop.f32.mrf.mxu0
    %v1652 = vadd.f32 0.0, %v1651
    %v1653 = vpop.f32.mrf.mxu0
    %v1654 = vadd.f32 0.0, %v1653
    %v1655 = vpop.f32.mrf.mxu0
    %v1656 = vpop.f32.mrf.mxu0
    %1657 = vdwg.mxu0
    %1658 = vmatprep.subr.bf16.mxu0 %v732
    %1659 = vmatpush1.bf16.msra.mxu0 %v731
    %1660 = vmatprep.subr.bf16.mxu0 %v728
    %1661 = vmatpush1.bf16.msra.mxu0 %v727
    %1662 = vmatprep.subr.bf16.mxu0 %v724
    %1663 = vmatpush1.bf16.msra.mxu0 %v723
    %1664 = vmatprep.subr.bf16.mxu0 %v720
    %1665 = vmatpush1.bf16.msra.mxu0 %v719
    %1666 = vmatprep.subr.bf16.mxu0 %v716
    %1667 = vmatpush1.bf16.msra.mxu0 %v715
    %1668 = vmatprep.subr.bf16.mxu0 %v712
    %1669 = vmatpush1.bf16.msra.mxu0 %v711
    %1670 = vmatprep.subr.bf16.mxu0 %v708
    %1671 = vmatpush1.bf16.msra.mxu0 %v707
    %1672 = vmatprep.subr.bf16.mxu0 %v704
    %1673 = vmatpush1.bf16.msra.mxu0 %v703
    %1674 = vmatprep.subr.bf16.mxu0 0
    %1675 = vmatpush2.bf16.msra.mxu0 0
    %1676 = vmatprep.subr.bf16.mxu0 0
    %1677 = vmatpush2.bf16.msra.mxu0 0
    %1678 = vmatprep.subr.bf16.mxu0 0
    %1679 = vmatpush2.bf16.msra.mxu0 0
    %1680 = vmatprep.subr.bf16.mxu0 0
    %1681 = vmatpush2.bf16.msra.mxu0 0
    %1682 = vmatprep.subr.bf16.mxu0 0
    %1683 = vmatpush2.bf16.msra.mxu0 0
    %1684 = vmatprep.subr.bf16.mxu0 0
    %1685 = vmatpush2.bf16.msra.mxu0 0
    %1686 = vmatprep.subr.bf16.mxu0 0
    %1687 = vmatpush2.bf16.msra.mxu0 0
    %1688 = vmatprep.subr.bf16.mxu0 0
    %1689 = vmatpush2.bf16.msra.mxu0 0
    %1690 = vmatprep.mubr.bf16.mxu0 0
    %1691 = vmatmul.mubr.bf16.gmra.mxu0 %v1616
    %v1692 = vpop.f32.mrf.mxu0
    %v1693 = vadd.f32 0.0, %v1692
    %v1694 = vpop.f32.mrf.mxu0
    %v1695 = vadd.f32 0.0, %v1694
    %v1696 = vpop.f32.mrf.mxu0
    %v1697 = vpop.f32.mrf.mxu0
    %1698 = vdwg.mxu0
    %v1703 = vcombine.low %v1652, %v1654
    %v1704 = vcombine.low %v1693, %v1695
    %v1706 = vunpack.c.l.s4 1966171168
    %v1707 = vunpack.c.0.s8 %v1706
    %v1708 = vlaneseq
    %v1709 = vshrl.u32 %v1708, 7
    %v1710 = vsub.s32 %v1707, %v1709
    %v1711 = vrot.slane %v1703, %v1710
    %v1713 = vunpack.c.l.s4 1966171168
    %v1714 = vunpack.c.0.s8 %v1713
    %v1715 = vlaneseq
    %v1716 = vshrl.u32 %v1715, 7
    %v1717 = vsub.s32 %v1714, %v1716
    %v1718 = vrot.slane %v1704, %v1717
    %v1719 = vcombine.low %v1711, %v1718
    %v1721 = vunpack.c.l.s4 1966171168
    %v1722 = vunpack.c.0.s8 %v1721
    %v1723 = vlaneseq
    %v1724 = vshrl.u32 %v1723, 7
    %v1725 = vsub.s32 %v1722, %v1724
    %v1726 = vrot.slane %v1719, %v1725
    %v1728 = vadd.f32 %v1615, %v1726
    %v1729 = vxor.u32 %v1728, 2147483648
    %v1730 = vmul.f32 %v1729, 1.442695
    %v1731 = vpow.pop %v1730
    %v1732 = vadd.f32 %v1731, 1.0
    %v1733 = vrcp.pop %v1732
    %v1734 = vmul.f32 1.0, %v1733
    %v1736 = vrot.slane %v1728, 2
    %v1738 = vtanh.pop %v1736
    %v1739 = vrot.slane %v1728, 3
    %v1741 = vxor.u32 %v1739, 2147483648
    %v1742 = vmul.f32 %v1741, 1.442695
    %v1743 = vpow.pop %v1742
    %v1744 = vadd.f32 %v1743, 1.0
    %v1745 = vrcp.pop %v1744
    %v1746 = vmul.f32 1.0, %v1745
    %v1748 = vrot.slane %v1734, 1
    %v1750 = vmul.f32 %v1748, %v1610
    %v1751 = vmul.f32 %v1734, %v1738
    %v1752 = vadd.f32 %v1750, %v1751
    %v1753 = vtanh.pop %v1752
    %v1754 = vmul.f32 %v1746, %v1753
    %1755 = vst [vmem:[#allocation2 + $0x6] sm:$0x1] %v1754
    %s1756 = scalar_lea.vmem [#allocation3], 7
    %v1757 = vld [vmem:[%s1756] ss:$8 sm:$0xf]
    %v1758 = vpack.c.bf16 %v1754, %v1754
    %1759 = vmatprep.subr.bf16.mxu0 %v730
    %1760 = vmatpush1.bf16.msra.mxu0 %v729
    %1761 = vmatprep.subr.bf16.mxu0 %v726
    %1762 = vmatpush1.bf16.msra.mxu0 %v725
    %1763 = vmatprep.subr.bf16.mxu0 %v722
    %1764 = vmatpush1.bf16.msra.mxu0 %v721
    %1765 = vmatprep.subr.bf16.mxu0 %v718
    %1766 = vmatpush1.bf16.msra.mxu0 %v717
    %1767 = vmatprep.subr.bf16.mxu0 %v714
    %1768 = vmatpush1.bf16.msra.mxu0 %v713
    %1769 = vmatprep.subr.bf16.mxu0 %v710
    %1770 = vmatpush1.bf16.msra.mxu0 %v709
    %1771 = vmatprep.subr.bf16.mxu0 %v706
    %1772 = vmatpush1.bf16.msra.mxu0 %v705
    %1773 = vmatprep.subr.bf16.mxu0 %v702
    %1774 = vmatpush1.bf16.msra.mxu0 %v701
    %1775 = vmatprep.subr.bf16.mxu0 0
    %1776 = vmatpush2.bf16.msra.mxu0 0
    %1777 = vmatprep.subr.bf16.mxu0 0
    %1778 = vmatpush2.bf16.msra.mxu0 0
    %1779 = vmatprep.subr.bf16.mxu0 0
    %1780 = vmatpush2.bf16.msra.mxu0 0
    %1781 = vmatprep.subr.bf16.mxu0 0
    %1782 = vmatpush2.bf16.msra.mxu0 0
    %1783 = vmatprep.subr.bf16.mxu0 0
    %1784 = vmatpush2.bf16.msra.mxu0 0
    %1785 = vmatprep.subr.bf16.mxu0 0
    %1786 = vmatpush2.bf16.msra.mxu0 0
    %1787 = vmatprep.subr.bf16.mxu0 0
    %1788 = vmatpush2.bf16.msra.mxu0 0
    %1789 = vmatprep.subr.bf16.mxu0 0
    %1790 = vmatpush2.bf16.msra.mxu0 0
    %1791 = vmatprep.mubr.bf16.mxu0 0
    %1792 = vmatmul.mubr.bf16.gmra.mxu0 %v1758
    %v1793 = vpop.f32.mrf.mxu0
    %v1794 = vadd.f32 0.0, %v1793
    %v1795 = vpop.f32.mrf.mxu0
    %v1796 = vadd.f32 0.0, %v1795
    %v1797 = vpop.f32.mrf.mxu0
    %v1798 = vpop.f32.mrf.mxu0
    %1799 = vdwg.mxu0
    %1800 = vmatprep.subr.bf16.mxu0 %v732
    %1801 = vmatpush1.bf16.msra.mxu0 %v731
    %1802 = vmatprep.subr.bf16.mxu0 %v728
    %1803 = vmatpush1.bf16.msra.mxu0 %v727
    %1804 = vmatprep.subr.bf16.mxu0 %v724
    %1805 = vmatpush1.bf16.msra.mxu0 %v723
    %1806 = vmatprep.subr.bf16.mxu0 %v720
    %1807 = vmatpush1.bf16.msra.mxu0 %v719
    %1808 = vmatprep.subr.bf16.mxu0 %v716
    %1809 = vmatpush1.bf16.msra.mxu0 %v715
    %1810 = vmatprep.subr.bf16.mxu0 %v712
    %1811 = vmatpush1.bf16.msra.mxu0 %v711
    %1812 = vmatprep.subr.bf16.mxu0 %v708
    %1813 = vmatpush1.bf16.msra.mxu0 %v707
    %1814 = vmatprep.subr.bf16.mxu0 %v704
    %1815 = vmatpush1.bf16.msra.mxu0 %v703
    %1816 = vmatprep.subr.bf16.mxu0 0
    %1817 = vmatpush2.bf16.msra.mxu0 0
    %1818 = vmatprep.subr.bf16.mxu0 0
    %1819 = vmatpush2.bf16.msra.mxu0 0
    %1820 = vmatprep.subr.bf16.mxu0 0
    %1821 = vmatpush2.bf16.msra.mxu0 0
    %1822 = vmatprep.subr.bf16.mxu0 0
    %1823 = vmatpush2.bf16.msra.mxu0 0
    %1824 = vmatprep.subr.bf16.mxu0 0
    %1825 = vmatpush2.bf16.msra.mxu0 0
    %1826 = vmatprep.subr.bf16.mxu0 0
    %1827 = vmatpush2.bf16.msra.mxu0 0
    %1828 = vmatprep.subr.bf16.mxu0 0
    %1829 = vmatpush2.bf16.msra.mxu0 0
    %1830 = vmatprep.subr.bf16.mxu0 0
    %1831 = vmatpush2.bf16.msra.mxu0 0
    %1832 = vmatprep.mubr.bf16.mxu0 0
    %1833 = vmatmul.mubr.bf16.gmra.mxu0 %v1758
    %v1834 = vpop.f32.mrf.mxu0
    %v1835 = vadd.f32 0.0, %v1834
    %v1836 = vpop.f32.mrf.mxu0
    %v1837 = vadd.f32 0.0, %v1836
    %v1838 = vpop.f32.mrf.mxu0
    %v1839 = vpop.f32.mrf.mxu0
    %1840 = vdwg.mxu0
    %v1845 = vcombine.low %v1794, %v1796
    %v1846 = vcombine.low %v1835, %v1837
    %v1848 = vunpack.c.l.s4 1966171168
    %v1849 = vunpack.c.0.s8 %v1848
    %v1850 = vlaneseq
    %v1851 = vshrl.u32 %v1850, 7
    %v1852 = vsub.s32 %v1849, %v1851
    %v1853 = vrot.slane %v1845, %v1852
    %v1855 = vunpack.c.l.s4 1966171168
    %v1856 = vunpack.c.0.s8 %v1855
    %v1857 = vlaneseq
    %v1858 = vshrl.u32 %v1857, 7
    %v1859 = vsub.s32 %v1856, %v1858
    %v1860 = vrot.slane %v1846, %v1859
    %v1861 = vcombine.low %v1853, %v1860
    %v1863 = vunpack.c.l.s4 1966171168
    %v1864 = vunpack.c.0.s8 %v1863
    %v1865 = vlaneseq
    %v1866 = vshrl.u32 %v1865, 7
    %v1867 = vsub.s32 %v1864, %v1866
    %v1868 = vrot.slane %v1861, %v1867
    %v1870 = vadd.f32 %v1757, %v1868
    %v1871 = vxor.u32 %v1870, 2147483648
    %v1872 = vmul.f32 %v1871, 1.442695
    %v1873 = vpow.pop %v1872
    %v1874 = vadd.f32 %v1873, 1.0
    %v1875 = vrcp.pop %v1874
    %v1876 = vmul.f32 1.0, %v1875
    %v1878 = vrot.slane %v1870, 2
    %v1880 = vtanh.pop %v1878
    %v1881 = vrot.slane %v1870, 3
    %v1883 = vxor.u32 %v1881, 2147483648
    %v1884 = vmul.f32 %v1883, 1.442695
    %v1885 = vpow.pop %v1884
    %v1886 = vadd.f32 %v1885, 1.0
    %v1887 = vrcp.pop %v1886
    %v1888 = vmul.f32 1.0, %v1887
    %v1890 = vrot.slane %v1876, 1
    %v1892 = vmul.f32 %v1890, %v1752
    %v1893 = vmul.f32 %v1876, %v1880
    %v1894 = vadd.f32 %v1892, %v1893
    %v1895 = vtanh.pop %v1894
    %v1896 = vmul.f32 %v1888, %v1895
    %1897 = vst [vmem:[#allocation2 + $0x7] sm:$0x1] %v1896
    %v1898 = vld [vmem:[#allocation2] sm:$0xff]
    %v1899 = vpack.c.bf16 %v456, %v456
    %v1900 = vpack.c.bf16 %v454, %v454
    %1901 = vmatprep.subr.bf16.mxu0 0
    %1902 = vmatpush1.bf16.xpose.msra.mxu0 0
    %1903 = vmatprep.subr.bf16.mxu0 0
    %1904 = vmatpush1.bf16.xpose.msra.mxu0 0
    %1905 = vmatprep.subr.bf16.mxu0 0
    %1906 = vmatpush1.bf16.xpose.msra.mxu0 0
    %1907 = vmatprep.subr.bf16.mxu0 0
    %1908 = vmatpush1.bf16.xpose.msra.mxu0 0
    %1909 = vmatprep.subr.bf16.mxu0 0
    %1910 = vmatpush1.bf16.xpose.msra.mxu0 0
    %1911 = vmatprep.subr.bf16.mxu0 0
    %1912 = vmatpush1.bf16.xpose.msra.mxu0 0
    %1913 = vmatprep.subr.bf16.mxu0 0
    %1914 = vmatpush1.bf16.xpose.msra.mxu0 0
    %1915 = vmatprep.subr.bf16.mxu0 0
    %1916 = vmatpush1.bf16.xpose.msra.mxu0 %v1900
    %1917 = vmatprep.subr.bf16.mxu0 0
    %1918 = vmatpush2.bf16.xpose.msra.mxu0 0
    %1919 = vmatprep.subr.bf16.mxu0 0
    %1920 = vmatpush2.bf16.xpose.msra.mxu0 0
    %1921 = vmatprep.subr.bf16.mxu0 0
    %1922 = vmatpush2.bf16.xpose.msra.mxu0 0
    %1923 = vmatprep.subr.bf16.mxu0 0
    %1924 = vmatpush2.bf16.xpose.msra.mxu0 0
    %1925 = vmatprep.subr.bf16.mxu0 0
    %1926 = vmatpush2.bf16.xpose.msra.mxu0 0
    %1927 = vmatprep.subr.bf16.mxu0 0
    %1928 = vmatpush2.bf16.xpose.msra.mxu0 0
    %1929 = vmatprep.subr.bf16.mxu0 0
    %1930 = vmatpush2.bf16.xpose.msra.mxu0 0
    %1931 = vmatprep.subr.bf16.mxu0 0
    %1932 = vmatpush2.bf16.xpose.msra.mxu0 0
    %1933 = vmatprep.mubr.bf16.mxu0 0
    %1934 = vmatmul.mubr.bf16.gmra.mxu0 %v1899
    %v1935 = vpop.f32.mrf.mxu0
    %v1936 = vadd.f32 0.0, %v1935
    %v1937 = vpop.f32.mrf.mxu0
    %v1938 = vpop.f32.mrf.mxu0
    %v1939 = vpop.f32.mrf.mxu0
    %1940 = vdwg.mxu0
    %v1941 = vmul.f32 %v1936, 0.06
    %vm1942 = vcmask 64512
    %v1943 = vsel %vm1942, %v1941, -inf
    %1944 = vmax.xlane.f32.xlu0 %v1943
    %v1945 = vpop.xlane.xlu0 %1944
    %v1946 = vsub.f32 %v1941, %v1945
    %v1947 = vmul.f32 %v1946, 1.442695
    %v1948 = vpow.pop %v1947
    %v1949 = vsel %vm1942, %v1948, 0.0
    %1950 = vadd.xlane.f32.xlu0 %v1949
    %v1951 = vpop.xlane.xlu0 %1950
    %v1952 = vrcp.pop %v1951
    %v1953 = vmul.f32 %v1948, %v1952
    %1954 = vst [vmem:[#allocation16] sm:$0xff] 0.0
    %1955 = vst.msk [vmem:[#allocation16] sm:$0xff] %vm1942, %v1953
    %v1956 = vpack.c.bf16 %v1953, %v1953
    %v1957 = vpack.c.bf16 %v1898, %v1898
    %1958 = vxpose.xlu0.c.b16.start [1/8] %v1956, 128
    %1959 = vxpose.xlu0.c.b16.cont [2/8] 0, 128
    %1960 = vxpose.xlu0.c.b16.cont [3/8] 0, 128
    %1961 = vxpose.xlu0.c.b16.cont [4/8] 0, 128
    %1962 = vxpose.xlu0.c.b16.cont [5/8] 0, 128
    %1963 = vxpose.xlu0.c.b16.cont [6/8] 0, 128
    %1964 = vxpose.xlu0.c.b16.cont [7/8] 0, 128
    %1965 = vxpose.xlu0.c.b16.end [8/8] 0, 128
    %v1966 = vpop.trf.xlu0
    %v1967 = vpop.trf.xlu0
    %v1968 = vpop.trf.xlu0
    %v1969 = vpop.trf.xlu0
    %v1970 = vpop.trf.xlu0
    %v1971 = vpop.trf.xlu0
    %v1972 = vpop.trf.xlu0
    %v1973 = vpop.trf.xlu0
    %v1975 = vsel %vm1942, %v1966, 0
    %vm1977 = vcmask 1043456
    %v1979 = vsel %vm1977, %v1957, 0
    %1981 = vmatprep.subr.bf16.mxu0 0
    %1982 = vmatpush1.bf16.msra.mxu0 0
    %1983 = vmatprep.subr.bf16.mxu0 0
    %1984 = vmatpush1.bf16.msra.mxu0 0
    %1985 = vmatprep.subr.bf16.mxu0 0
    %1986 = vmatpush1.bf16.msra.mxu0 0
    %1987 = vmatprep.subr.bf16.mxu0 0
    %1988 = vmatpush1.bf16.msra.mxu0 0
    %1989 = vmatprep.subr.bf16.mxu0 0
    %1990 = vmatpush1.bf16.msra.mxu0 0
    %1991 = vmatprep.subr.bf16.mxu0 0
    %1992 = vmatpush1.bf16.msra.mxu0 0
    %1993 = vmatprep.subr.bf16.mxu0 0
    %1994 = vmatpush1.bf16.msra.mxu0 0
    %1995 = vmatprep.subr.bf16.mxu0 0
    %1996 = vmatpush1.bf16.msra.mxu0 %v1979
    %1997 = vmatprep.subr.bf16.mxu0 0
    %1998 = vmatpush2.bf16.msra.mxu0 0
    %1999 = vmatprep.subr.bf16.mxu0 0
    %2000 = vmatpush2.bf16.msra.mxu0 0
    %2001 = vmatprep.subr.bf16.mxu0 0
    %2002 = vmatpush2.bf16.msra.mxu0 0
    %2003 = vmatprep.subr.bf16.mxu0 0
    %2004 = vmatpush2.bf16.msra.mxu0 0
    %2005 = vmatprep.subr.bf16.mxu0 0
    %2006 = vmatpush2.bf16.msra.mxu0 0
    %2007 = vmatprep.subr.bf16.mxu0 0
    %2008 = vmatpush2.bf16.msra.mxu0 0
    %2009 = vmatprep.subr.bf16.mxu0 0
    %2010 = vmatpush2.bf16.msra.mxu0 0
    %2011 = vmatprep.subr.bf16.mxu0 0
    %2012 = vmatpush2.bf16.msra.mxu0 0
    %2013 = vmatprep.mubr.bf16.mxu0 0
    %2014 = vmatmul.mubr.bf16.gmra.mxu0 %v1975
    %v2015 = vpop.f32.mrf.mxu0
    %v2016 = vadd.f32 0.0, %v2015
    %v2017 = vpop.f32.mrf.mxu0
    %v2018 = vpop.f32.mrf.mxu0
    %v2019 = vpop.f32.mrf.mxu0
    %2020 = vdwg.mxu0
    %v2021 = vpack.c.bf16 %v2016, %v2016
    %v2022 = vld [vmem:[#allocation10] sm:$0xf]
    %v2023 = vld [vmem:[#allocation10 + $0x4] sm:$0xf]
    %v2024 = vld [vmem:[#allocation10 + $0x8] sm:$0xf]
    %v2025 = vld [vmem:[#allocation10 + $0xc] sm:$0xf]
    %v2026 = vld [vmem:[#allocation10 + $0x10] sm:$0xf]
    %v2027 = vld [vmem:[#allocation10 + $0x14] sm:$0xf]
    %v2028 = vld [vmem:[#allocation10 + $0x18] sm:$0xf]
    %v2029 = vld [vmem:[#allocation10 + $0x1c] sm:$0xf]
    %v2030 = vld [vmem:[#allocation10 + $0x20] sm:$0xf]
    %v2031 = vld [vmem:[#allocation10 + $0x24] sm:$0xf]
    %v2032 = vld [vmem:[#allocation10 + $0x28] sm:$0xf]
    %v2033 = vld [vmem:[#allocation10 + $0x2c] sm:$0xf]
    %v2034 = vld [vmem:[#allocation10 + $0x30] sm:$0xf]
    %v2035 = vld [vmem:[#allocation10 + $0x34] sm:$0xf]
    %v2036 = vld [vmem:[#allocation10 + $0x38] sm:$0xf]
    %v2037 = vld [vmem:[#allocation10 + $0x3c] sm:$0xf]
    %v2054 = vunpack.c.l.b16 %v2022
    %v2055 = vunpack.c.l.b16 %v2023
    %v2056 = vunpack.c.l.b16 %v2024
    %v2057 = vunpack.c.l.b16 %v2025
    %v2058 = vunpack.c.l.b16 %v2026
    %v2059 = vunpack.c.l.b16 %v2027
    %v2060 = vunpack.c.l.b16 %v2028
    %v2061 = vunpack.c.l.b16 %v2029
    %v2062 = vunpack.c.l.b16 %v2030
    %v2063 = vunpack.c.l.b16 %v2031
    %v2064 = vunpack.c.l.b16 %v2032
    %v2065 = vunpack.c.l.b16 %v2033
    %v2066 = vunpack.c.l.b16 %v2034
    %v2067 = vunpack.c.l.b16 %v2035
    %v2068 = vunpack.c.l.b16 %v2036
    %v2069 = vunpack.c.l.b16 %v2037
    %v2070 = vpack.c.b16 %v2055, %v2054
    %v2071 = vpack.c.b16 %v2057, %v2056
    %v2072 = vpack.c.b16 %v2059, %v2058
    %v2073 = vpack.c.b16 %v2061, %v2060
    %v2074 = vpack.c.b16 %v2063, %v2062
    %v2075 = vpack.c.b16 %v2065, %v2064
    %v2076 = vpack.c.b16 %v2067, %v2066
    %v2077 = vpack.c.b16 %v2069, %v2068
    %2086 = vmatprep.subr.bf16.mxu0 0
    %2087 = vmatpush1.bf16.msra.mxu0 %v2077
    %2088 = vmatprep.subr.bf16.mxu0 0
    %2089 = vmatpush1.bf16.msra.mxu0 %v2076
    %2090 = vmatprep.subr.bf16.mxu0 0
    %2091 = vmatpush1.bf16.msra.mxu0 %v2075
    %2092 = vmatprep.subr.bf16.mxu0 0
    %2093 = vmatpush1.bf16.msra.mxu0 %v2074
    %2094 = vmatprep.subr.bf16.mxu0 0
    %2095 = vmatpush1.bf16.msra.mxu0 %v2073
    %2096 = vmatprep.subr.bf16.mxu0 0
    %2097 = vmatpush1.bf16.msra.mxu0 %v2072
    %2098 = vmatprep.subr.bf16.mxu0 0
    %2099 = vmatpush1.bf16.msra.mxu0 %v2071
    %2100 = vmatprep.subr.bf16.mxu0 0
    %2101 = vmatpush1.bf16.msra.mxu0 %v2070
    %2102 = vmatprep.subr.bf16.mxu0 0
    %2103 = vmatpush2.bf16.msra.mxu0 0
    %2104 = vmatprep.subr.bf16.mxu0 0
    %2105 = vmatpush2.bf16.msra.mxu0 0
    %2106 = vmatprep.subr.bf16.mxu0 0
    %2107 = vmatpush2.bf16.msra.mxu0 0
    %2108 = vmatprep.subr.bf16.mxu0 0
    %2109 = vmatpush2.bf16.msra.mxu0 0
    %2110 = vmatprep.subr.bf16.mxu0 0
    %2111 = vmatpush2.bf16.msra.mxu0 0
    %2112 = vmatprep.subr.bf16.mxu0 0
    %2113 = vmatpush2.bf16.msra.mxu0 0
    %2114 = vmatprep.subr.bf16.mxu0 0
    %2115 = vmatpush2.bf16.msra.mxu0 0
    %2116 = vmatprep.subr.bf16.mxu0 0
    %2117 = vmatpush2.bf16.msra.mxu0 0
    %2118 = vmatprep.mubr.bf16.mxu0 0
    %2119 = vmatmul.mubr.bf16.gmra.mxu0 %v2021
    %v2120 = vpop.f32.mrf.mxu0
    %v2121 = vadd.f32 %v129, %v2120
    %v2122 = vpop.f32.mrf.mxu0
    %v2123 = vpop.f32.mrf.mxu0
    %v2124 = vpop.f32.mrf.mxu0
    %2125 = vdwg.mxu0
    %v2126 = vld [vmem:[%s5] sm:$0x1]
    %v2127 = vld [vmem:[%s6] sm:$0x1]
    %2128 = vadd.xlane.f32.xlu0 %v2121
    %v2129 = vpop.xlane.xlu0 %2128
    %v2130 = vrcp.pop 128.0
    %v2131 = vmul.f32 %v2129, %v2130
    %v2132 = vsub.f32 %v2121, %v2131
    %v2133 = vmul.f32 %v2132, %v2132
    %2134 = vadd.xlane.f32.xlu0 %v2133
    %v2135 = vpop.xlane.xlu0 %2134
    %v2136 = vrcp.pop 127.0
    %v2137 = vmul.f32 %v2135, %v2136
    %v2138 = vrsqrt.pop %v2137
    %v2139 = vmul.f32 %v2137, %v2138
    %vm2140 = vcmp.eq.f32.partialorder %v2137, inf
    %v2141 = vsel %vm2140, %v2137, %v2139
    %vm2142 = vcmp.eq.f32.partialorder %v2137, 0.0
    %v2143 = vand.u32 %v2137, 2147483648
    %v2144 = vsel %vm2142, %v2143, %v2141
    %v2145 = vadd.f32 %v2144, 1e-06
    %v2146 = vrcp.pop %v2145
    %v2148 = vlaneseq
    %v2149 = vshrl.u32 %v2148, 7
    %v2150 = vsub.s32 0, %v2149
    %v2151 = vrot.slane %v2126, %v2150
    %v2153 = vmul.f32 %v2151, %v2132
    %v2154 = vmul.f32 %v2153, %v2146
    %v2156 = vlaneseq
    %v2157 = vshrl.u32 %v2156, 7
    %v2158 = vsub.s32 0, %v2157
    %v2159 = vrot.slane %v2127, %v2158
    %v2161 = vadd.f32 %v2154, %v2159
    %v2162 = vpack.c.bf16 %v2161, %v2161
    %v2163 = vld [vmem:[#allocation12] sm:$0xf]
    %v2164 = vld [vmem:[#allocation12 + $0x4] sm:$0xf]
    %v2165 = vld [vmem:[#allocation12 + $0x8] sm:$0xf]
    %v2166 = vld [vmem:[#allocation12 + $0xc] sm:$0xf]
    %v2167 = vld [vmem:[#allocation12 + $0x10] sm:$0xf]
    %v2168 = vld [vmem:[#allocation12 + $0x14] sm:$0xf]
    %v2169 = vld [vmem:[#allocation12 + $0x18] sm:$0xf]
    %v2170 = vld [vmem:[#allocation12 + $0x1c] sm:$0xf]
    %v2171 = vld [vmem:[#allocation12 + $0x20] sm:$0xf]
    %v2172 = vld [vmem:[#allocation12 + $0x24] sm:$0xf]
    %v2173 = vld [vmem:[#allocation12 + $0x28] sm:$0xf]
    %v2174 = vld [vmem:[#allocation12 + $0x2c] sm:$0xf]
    %v2175 = vld [vmem:[#allocation12 + $0x30] sm:$0xf]
    %v2176 = vld [vmem:[#allocation12 + $0x34] sm:$0xf]
    %v2177 = vld [vmem:[#allocation12 + $0x38] sm:$0xf]
    %v2178 = vld [vmem:[#allocation12 + $0x3c] sm:$0xf]
    %v2179 = vld [vmem:[%s8] sm:$0x1]
    %v2181 = vlaneseq
    %v2182 = vshrl.u32 %v2181, 7
    %v2183 = vsub.s32 0, %v2182
    %v2184 = vrot.slane %v2179, %v2183
    %v2202 = vunpack.c.l.b16 %v2163
    %v2203 = vunpack.c.l.b16 %v2164
    %v2204 = vunpack.c.l.b16 %v2165
    %v2205 = vunpack.c.l.b16 %v2166
    %v2206 = vunpack.c.l.b16 %v2167
    %v2207 = vunpack.c.l.b16 %v2168
    %v2208 = vunpack.c.l.b16 %v2169
    %v2209 = vunpack.c.l.b16 %v2170
    %v2210 = vunpack.c.l.b16 %v2171
    %v2211 = vunpack.c.l.b16 %v2172
    %v2212 = vunpack.c.l.b16 %v2173
    %v2213 = vunpack.c.l.b16 %v2174
    %v2214 = vunpack.c.l.b16 %v2175
    %v2215 = vunpack.c.l.b16 %v2176
    %v2216 = vunpack.c.l.b16 %v2177
    %v2217 = vunpack.c.l.b16 %v2178
    %v2218 = vpack.c.b16 %v2203, %v2202
    %v2219 = vpack.c.b16 %v2205, %v2204
    %v2220 = vpack.c.b16 %v2207, %v2206
    %v2221 = vpack.c.b16 %v2209, %v2208
    %v2222 = vpack.c.b16 %v2211, %v2210
    %v2223 = vpack.c.b16 %v2213, %v2212
    %v2224 = vpack.c.b16 %v2215, %v2214
    %v2225 = vpack.c.b16 %v2217, %v2216
    %2234 = vmatprep.subr.bf16.mxu0 0
    %2235 = vmatpush1.bf16.msra.mxu0 %v2225
    %2236 = vmatprep.subr.bf16.mxu0 0
    %2237 = vmatpush1.bf16.msra.mxu0 %v2224
    %2238 = vmatprep.subr.bf16.mxu0 0
    %2239 = vmatpush1.bf16.msra.mxu0 %v2223
    %2240 = vmatprep.subr.bf16.mxu0 0
    %2241 = vmatpush1.bf16.msra.mxu0 %v2222
    %2242 = vmatprep.subr.bf16.mxu0 0
    %2243 = vmatpush1.bf16.msra.mxu0 %v2221
    %2244 = vmatprep.subr.bf16.mxu0 0
    %2245 = vmatpush1.bf16.msra.mxu0 %v2220
    %2246 = vmatprep.subr.bf16.mxu0 0
    %2247 = vmatpush1.bf16.msra.mxu0 %v2219
    %2248 = vmatprep.subr.bf16.mxu0 0
    %2249 = vmatpush1.bf16.msra.mxu0 %v2218
    %2250 = vmatprep.subr.bf16.mxu0 0
    %2251 = vmatpush2.bf16.msra.mxu0 0
    %2252 = vmatprep.subr.bf16.mxu0 0
    %2253 = vmatpush2.bf16.msra.mxu0 0
    %2254 = vmatprep.subr.bf16.mxu0 0
    %2255 = vmatpush2.bf16.msra.mxu0 0
    %2256 = vmatprep.subr.bf16.mxu0 0
    %2257 = vmatpush2.bf16.msra.mxu0 0
    %2258 = vmatprep.subr.bf16.mxu0 0
    %2259 = vmatpush2.bf16.msra.mxu0 0
    %2260 = vmatprep.subr.bf16.mxu0 0
    %2261 = vmatpush2.bf16.msra.mxu0 0
    %2262 = vmatprep.subr.bf16.mxu0 0
    %2263 = vmatpush2.bf16.msra.mxu0 0
    %2264 = vmatprep.subr.bf16.mxu0 0
    %2265 = vmatpush2.bf16.msra.mxu0 0
    %2266 = vmatprep.mubr.bf16.mxu0 0
    %2267 = vmatmul.mubr.bf16.gmra.mxu0 %v2162
    %v2268 = vpop.f32.mrf.mxu0
    %v2269 = vadd.f32 %v2184, %v2268
    %v2270 = vpop.f32.mrf.mxu0
    %v2271 = vpop.f32.mrf.mxu0
    %v2272 = vpop.f32.mrf.mxu0
    %2273 = vdwg.mxu0
    %v2274 = vmax.f32 %v2269, 0.0
    %v2275 = vld [vmem:[%s9] sm:$0x1]
    %v2276 = vld [vmem:[%s10] sm:$0x1]
    %2277 = vadd.xlane.f32.xlu0 %v2274
    %v2278 = vpop.xlane.xlu0 %2277
    %v2279 = vmul.f32 %v2278, %v2130
    %v2280 = vsub.f32 %v2274, %v2279
    %v2281 = vmul.f32 %v2280, %v2280
    %2282 = vadd.xlane.f32.xlu0 %v2281
    %v2283 = vpop.xlane.xlu0 %2282
    %v2284 = vmul.f32 %v2283, %v2136
    %v2285 = vrsqrt.pop %v2284
    %v2286 = vmul.f32 %v2284, %v2285
    %vm2287 = vcmp.eq.f32.partialorder %v2284, inf
    %v2288 = vsel %vm2287, %v2284, %v2286
    %vm2289 = vcmp.eq.f32.partialorder %v2284, 0.0
    %v2290 = vand.u32 %v2284, 2147483648
    %v2291 = vsel %vm2289, %v2290, %v2288
    %v2292 = vadd.f32 %v2291, 1e-06
    %v2293 = vrcp.pop %v2292
    %v2295 = vlaneseq
    %v2296 = vshrl.u32 %v2295, 7
    %v2297 = vsub.s32 0, %v2296
    %v2298 = vrot.slane %v2275, %v2297
    %v2300 = vmul.f32 %v2298, %v2280
    %v2301 = vmul.f32 %v2300, %v2293
    %v2303 = vlaneseq
    %v2304 = vshrl.u32 %v2303, 7
    %v2305 = vsub.s32 0, %v2304
    %v2306 = vrot.slane %v2276, %v2305
    %v2308 = vadd.f32 %v2301, %v2306
    %v2309 = vpack.c.bf16 %v2308, %v2308
    %v2310 = vld [vmem:[#allocation13] sm:$0xf]
    %v2311 = vld [vmem:[#allocation13 + $0x4] sm:$0xf]
    %v2312 = vld [vmem:[#allocation13 + $0x8] sm:$0xf]
    %v2313 = vld [vmem:[#allocation13 + $0xc] sm:$0xf]
    %v2314 = vld [vmem:[#allocation13 + $0x10] sm:$0xf]
    %v2315 = vld [vmem:[#allocation13 + $0x14] sm:$0xf]
    %v2316 = vld [vmem:[#allocation13 + $0x18] sm:$0xf]
    %v2317 = vld [vmem:[#allocation13 + $0x1c] sm:$0xf]
    %v2318 = vld [vmem:[#allocation13 + $0x20] sm:$0xf]
    %v2319 = vld [vmem:[#allocation13 + $0x24] sm:$0xf]
    %v2320 = vld [vmem:[#allocation13 + $0x28] sm:$0xf]
    %v2321 = vld [vmem:[#allocation13 + $0x2c] sm:$0xf]
    %v2322 = vld [vmem:[#allocation13 + $0x30] sm:$0xf]
    %v2323 = vld [vmem:[#allocation13 + $0x34] sm:$0xf]
    %v2324 = vld [vmem:[#allocation13 + $0x38] sm:$0xf]
    %v2325 = vld [vmem:[#allocation13 + $0x3c] sm:$0xf]
    %v2326 = vld [vmem:[%s12] sm:$0x1]
    %v2328 = vlaneseq
    %v2329 = vshrl.u32 %v2328, 7
    %v2330 = vsub.s32 0, %v2329
    %v2331 = vrot.slane %v2326, %v2330
    %v2349 = vunpack.c.l.b16 %v2310
    %v2350 = vunpack.c.l.b16 %v2311
    %v2351 = vunpack.c.l.b16 %v2312
    %v2352 = vunpack.c.l.b16 %v2313
    %v2353 = vunpack.c.l.b16 %v2314
    %v2354 = vunpack.c.l.b16 %v2315
    %v2355 = vunpack.c.l.b16 %v2316
    %v2356 = vunpack.c.l.b16 %v2317
    %v2357 = vunpack.c.l.b16 %v2318
    %v2358 = vunpack.c.l.b16 %v2319
    %v2359 = vunpack.c.l.b16 %v2320
    %v2360 = vunpack.c.l.b16 %v2321
    %v2361 = vunpack.c.l.b16 %v2322
    %v2362 = vunpack.c.l.b16 %v2323
    %v2363 = vunpack.c.l.b16 %v2324
    %v2364 = vunpack.c.l.b16 %v2325
    %v2365 = vpack.c.b16 %v2350, %v2349
    %v2366 = vpack.c.b16 %v2352, %v2351
    %v2367 = vpack.c.b16 %v2354, %v2353
    %v2368 = vpack.c.b16 %v2356, %v2355
    %v2369 = vpack.c.b16 %v2358, %v2357
    %v2370 = vpack.c.b16 %v2360, %v2359
    %v2371 = vpack.c.b16 %v2362, %v2361
    %v2372 = vpack.c.b16 %v2364, %v2363
    %2381 = vmatprep.subr.bf16.mxu0 0
    %2382 = vmatpush1.bf16.msra.mxu0 %v2372
    %2383 = vmatprep.subr.bf16.mxu0 0
    %2384 = vmatpush1.bf16.msra.mxu0 %v2371
    %2385 = vmatprep.subr.bf16.mxu0 0
    %2386 = vmatpush1.bf16.msra.mxu0 %v2370
    %2387 = vmatprep.subr.bf16.mxu0 0
    %2388 = vmatpush1.bf16.msra.mxu0 %v2369
    %2389 = vmatprep.subr.bf16.mxu0 0
    %2390 = vmatpush1.bf16.msra.mxu0 %v2368
    %2391 = vmatprep.subr.bf16.mxu0 0
    %2392 = vmatpush1.bf16.msra.mxu0 %v2367
    %2393 = vmatprep.subr.bf16.mxu0 0
    %2394 = vmatpush1.bf16.msra.mxu0 %v2366
    %2395 = vmatprep.subr.bf16.mxu0 0
    %2396 = vmatpush1.bf16.msra.mxu0 %v2365
    %2397 = vmatprep.subr.bf16.mxu0 0
    %2398 = vmatpush2.bf16.msra.mxu0 0
    %2399 = vmatprep.subr.bf16.mxu0 0
    %2400 = vmatpush2.bf16.msra.mxu0 0
    %2401 = vmatprep.subr.bf16.mxu0 0
    %2402 = vmatpush2.bf16.msra.mxu0 0
    %2403 = vmatprep.subr.bf16.mxu0 0
    %2404 = vmatpush2.bf16.msra.mxu0 0
    %2405 = vmatprep.subr.bf16.mxu0 0
    %2406 = vmatpush2.bf16.msra.mxu0 0
    %2407 = vmatprep.subr.bf16.mxu0 0
    %2408 = vmatpush2.bf16.msra.mxu0 0
    %2409 = vmatprep.subr.bf16.mxu0 0
    %2410 = vmatpush2.bf16.msra.mxu0 0
    %2411 = vmatprep.subr.bf16.mxu0 0
    %2412 = vmatpush2.bf16.msra.mxu0 0
    %2413 = vmatprep.mubr.bf16.mxu0 0
    %2414 = vmatmul.mubr.bf16.gmra.mxu0 %v2309
    %v2415 = vpop.f32.mrf.mxu0
    %v2416 = vadd.f32 %v2331, %v2415
    %v2417 = vpop.f32.mrf.mxu0
    %v2418 = vpop.f32.mrf.mxu0
    %v2419 = vpop.f32.mrf.mxu0
    %2420 = vdwg.mxu0
    %v2421 = vxor.u32 %v2416, 2147483648
    %v2422 = vmul.f32 %v2421, 1.442695
    %v2423 = vpow.pop %v2422
    %v2424 = vadd.f32 %v2423, 1.0
    %v2425 = vrcp.pop %v2424
    %v2426 = vmul.f32 1.0, %v2425
    %2427 = vst [vmem:[#allocation15] sm:$0xff] %v2426
    // Predicated region
    $region78: #{tpu_custom_call.1} parent=1 // pred_check
      _
    $region79: #{tpu_custom_call.1} parent=1 // pred_check_branch
      %2429 = sbr.rel (0) target = $region81
    $region80: #{tpu_custom_call.1} parent=1 // pred_region
      %s2431 = ssub.s32 128, 128
      %2432 = vsyncadd [#allocation6], %s2431
      %s2434 = sshll.u32 [#allocation15], 4
      %s2435 = int_to_ptr.vmem [resolvable:$true] %s2434
      %2437 = dma.vmem_to_hbm [thread:$0]  %s2435, 128, %s13, [#allocation6]
    $region81: #{tpu_custom_call.1} parent=1 // pred_fallthru
      _
    // Predicated region
    $region82: #{tpu_custom_call.1} parent=1 // pred_check
      _
    $region83: #{tpu_custom_call.1} parent=1 // pred_check_branch
      %2439 = sbr.rel (0) target = $region85
    $region84: #{tpu_custom_call.1} parent=1 // pred_region
      %s2441 = ssub.s32 128, 128
      %2442 = vsyncadd [#allocation17], %s2441
      %s2444 = sshll.u32 [#allocation16], 4
      %s2445 = int_to_ptr.vmem [resolvable:$true] %s2444
      %2447 = dma.vmem_to_hbm [thread:$0]  %s2445, 128, %s14, [#allocation17]
    $region85: #{tpu_custom_call.1} parent=1 // pred_fallthru
      _
    // Predicated region
    $region86: #{tpu_custom_call.1} parent=1 // pred_check
      _
    $region87: #{tpu_custom_call.1} parent=1 // pred_check_branch
      %2449 = sbr.rel (0) target = $region89
    $region88: #{tpu_custom_call.1} parent=1 // pred_region
      %2450 = dma.done [#allocation6], 128
    $region89: #{tpu_custom_call.1} parent=1 // pred_fallthru
      _
    // Predicated region
    $region90: #{tpu_custom_call.1} parent=1 // pred_check
      _
    $region91: #{tpu_custom_call.1} parent=1 // pred_check_branch
      %2452 = sbr.rel (0) target = $region93
    $region92: #{tpu_custom_call.1} parent=1 // pred_region
      %2453 = dma.done [#allocation17], 128
    $region93: #{tpu_custom_call.1} parent=1 // pred_fallthru
      _
    %2454 = vsyncpa [#allocation5], 1
    %2455 = vsyncpa [#allocation8], 1
    %2456 = vsyncpa [#allocation11], 1
    %2457 = vsyncpa [#allocation14], 1
    %2458 = vsyncpa [#allocation6], 1
    %2459 = vsyncpa [#allocation17], 1

</llo_original>
